<compile_context>
chip_gen: v6e
topology: v6e:2x2x1
jax: 0.10.0
libtpu: 0.0.40
codegen_flags: <defaults>
</compile_context>

<pallas_src>
import functools

import jax
import jax.numpy as jnp
import numpy as np
from jax import lax
from jax.experimental import pallas as pl
from jax.experimental.pallas import tpu as pltpu

LN_EPS = 1e-5
_INV_SQRT2 = 0.7071067811865476


# --------------------------------- small math helpers ---------------------------------
def _round_up(x, m):
    return (x + m - 1) // m * m


def _layer_norm(v, w, b):
    mu = jnp.mean(v, axis=-1, keepdims=True)
    var = jnp.mean((v - mu) ** 2, axis=-1, keepdims=True)
    return (v - mu) * lax.rsqrt(var + LN_EPS) * w + b


def _sigmoid(v):
    # explicit 1/(1+exp(-x)): only exp + divide, guaranteed Mosaic lowerings
    return 1.0 / (1.0 + jnp.exp(-v))


def _erf_approx(v):
    # Abramowitz & Stegun 7.1.26 (|err| < 1.5e-7).  Built only from abs/exp/mul/add/
    # select so we never depend on an erf lowering inside Mosaic.
    a1, a2, a3, a4, a5 = (0.254829592, -0.284496736, 1.421413741,
                          -1.453152027, 1.061405429)
    p = 0.3275911
    x = jnp.abs(v)
    t = 1.0 / (1.0 + p * x)
    poly = ((((a5 * t + a4) * t + a3) * t + a2) * t + a1) * t
    e = 1.0 - poly * jnp.exp(-x * x)
    return jnp.where(v >= 0, e, -e)


def _gelu_exact(v):
    # matches torch.nn.GELU() (erf formulation) to ~1e-7
    return 0.5 * v * (1.0 + _erf_approx(v * _INV_SQRT2))


# ------------------- pass 1: fused ln_1 + input projection + LSTM scan -----------------
def _lstm_scan_kernel(x_ref, ln1w_ref, ln1b_ref, wih_ref, b_ref,
                      h0_ref, c0_ref, whh_ref,
                      h_all_ref, hout_ref, cout_ref,
                      gx_sc):
    bp, e = h0_ref.shape
    n_steps = x_ref.shape[0] // bp

    # carry lives in the resident (constant-index) output blocks
    @pl.when(pl.program_id(0) == 0)
    def _():
        hout_ref[...] = h0_ref[...]
        cout_ref[...] = c0_ref[...]

    # fused ln_1 + input projection for the whole time-chunk: one big MXU matmul,
    # no gx HBM round trip.
    x = x_ref[...].astype(jnp.float32)                               # (Tc*Bp, E)
    xn = _layer_norm(x, ln1w_ref[...], ln1b_ref[...])
    gx_sc[...] = jnp.dot(xn.astype(wih_ref.dtype), wih_ref[...],
                         preferred_element_type=jnp.float32) + b_ref[...]

    whh = whh_ref[...]                                               # loop-invariant

    def step(t, carry):
        h_prev, c_prev = carry
        r0 = pl.multiple_of(t * bp, bp)
        gates = gx_sc[pl.ds(r0, bp), :] + jnp.dot(
            h_prev.astype(whh.dtype), whh, preferred_element_type=jnp.float32)
        # gate columns were pre-permuted to [i | f | o | g]:
        # one sigmoid over 3E lanes + one tanh over E lanes per step.
        sig = _sigmoid(gates[:, :3 * e])
        i_g = sig[:, :e]
        f_g = sig[:, e:2 * e]
        o_g = sig[:, 2 * e:3 * e]
        g_g = jnp.tanh(gates[:, 3 * e:])
        c_new = f_g * c_prev + i_g * g_g
        h_new = o_g * jnp.tanh(c_new)
        h_all_ref[pl.ds(r0, bp), :] = h_new.astype(h_all_ref.dtype)
        return h_new, c_new

    unroll = next(u for u in (8, 4, 2, 1) if n_steps % u == 0)
    h_n, c_n = lax.fori_loop(0, n_steps, step,
                             (hout_ref[...], cout_ref[...]), unroll=unroll)
    hout_ref[...] = h_n
    cout_ref[...] = c_n


# --------------- pass 2: residual + ln_2 + MLP (hidden dim streamed) + residual --------
def _mlp_kernel(x_ref, h_ref, ln2w_ref, ln2b_ref,
                fcw_ref, fcb_ref, pjw_ref, pjb_ref,
                z_ref, yn_sc, acc_sc):
    j = pl.program_id(1)

    @pl.when(j == 0)
    def _():
        y = x_ref[...].astype(jnp.float32) + h_ref[...].astype(jnp.float32)
        yn_sc[...] = _layer_norm(y, ln2w_ref[...], ln2b_ref[...])
        acc_sc[...] = jnp.zeros_like(acc_sc)

    hfc = jnp.dot(yn_sc[...].astype(fcw_ref.dtype), fcw_ref[...],
                  preferred_element_type=jnp.float32) + fcb_ref[...]
    acc_sc[...] += jnp.dot(_gelu_exact(hfc).astype(pjw_ref.dtype), pjw_ref[...],
                           preferred_element_type=jnp.float32)

    @pl.when(j == pl.num_programs(1) - 1)
    def _():
        y = x_ref[...].astype(jnp.float32) + h_ref[...].astype(jnp.float32)
        z_ref[...] = (y + acc_sc[...] + pjb_ref[...]).astype(z_ref.dtype)


# ------------------------------- tiling / VMEM helpers ---------------------------------
def _vmem_cap_bytes():
    try:
        return int(pltpu.get_tpu_info().vmem_capacity_bytes)
    except Exception:
        return 64 << 20          # conservative (v7x) fallback


def _vmem_limit_bytes(est, cap):
    want = int(est * 1.5) + (8 << 20)          # >=20% headroom above residents
    ceil = int(cap * 0.9)
    return max(16 << 20, min(max(want, 32 << 20), ceil))


@functools.lru_cache(maxsize=None)
def _single_buffer_consts_supported():
    """Probe whether pipeline_mode=pl.Buffered(1) on a constant-index input BlockSpec
    lowers on this backend; otherwise fall back to default double buffering."""
    try:
        const_spec = pl.BlockSpec((8, 128), lambda i: (0, 0),
                                  pipeline_mode=pl.Buffered(1))

        def _probe(c_ref, x_ref, o_ref):
            o_ref[...] = x_ref[...] + c_ref[...]

        fn = pl.pallas_call(
            _probe,
            out_shape=jax.ShapeDtypeStruct((16, 128), jnp.float32),
            grid=(2,),
            in_specs=[const_spec, pl.BlockSpec((8, 128), lambda i: (i, 0))],
            out_specs=pl.BlockSpec((8, 128), lambda i: (i, 0)))
        jax.jit(fn).lower(jax.ShapeDtypeStruct((8, 128), jnp.float32),
                          jax.ShapeDtypeStruct((16, 128), jnp.float32)).compile()
        return True
    except Exception:
        return False


def _const_spec(shape, grid_ndim, single_buffer):
    if grid_ndim == 1:
        index_map = lambda i: (0,) * len(shape)
    else:
        index_map = lambda i, j: (0,) * len(shape)
    if single_buffer:
        return pl.BlockSpec(shape, index_map, pipeline_mode=pl.Buffered(1))
    return pl.BlockSpec(shape, index_map)


def _pick_t_chunk(T, per_t_bytes, budget):
    """Largest divisor of T whose per-chunk VMEM footprint fits the budget."""
    best = 1
    for cand in range(1, T + 1):
        if T % cand == 0 and cand * per_t_bytes <= budget:
            best = cand
    return best


def _pick_row_block(rows, unit, max_rows):
    """Row tile: a multiple of `unit` (itself a multiple of 8, divides rows), as large
    as possible under max_rows, leaving >=2 grid steps (megacore) when possible."""
    cap = min(max_rows, rows)
    if rows >= 2 * unit:
        cap = min(cap, rows // 2)
    cap = max(cap, unit)
    best = unit
    for cand in range(unit, cap + 1, unit):
        if rows % cand == 0:
            best = cand
    return best


def _pick_hidden_chunk(H, target):
    """Chunk of the 4E hidden dim: a multiple of 128 dividing H (or all of H)."""
    if H <= target or H % 128 != 0:
        return H
    best = 128
    for cand in range(128, target + 1, 128):
        if H % cand == 0:
            best = cand
    return best


# -------------------------------------- wrapper -----------------------------------------
def recurrent_residual_block(x_bte, params, hidden_in=None, *,
                             matmul_dtype=jnp.bfloat16):
    """x_bte: (B, T, E).  Returns (z (B,T,E), (h_n (1,B,E), c_n (1,B,E)))."""
    B, T, E = x_bte.shape
    H4 = 4 * E
    Bp = _round_up(B, 8)                    # sublane-align the serial-path matmul M dim
    rows = T * Bp

    cap = _vmem_cap_bytes()
    big_vmem = cap >= (96 << 20)            # v5e/v6e: 128 MiB; v7x: 64 MiB
    chunk_budget = (8 << 20) if big_vmem else (4 << 20)
    max_rows = 1024 if big_vmem else 512
    single_buf = _single_buffer_consts_supported()
    wbytes = jnp.dtype(matmul_dtype).itemsize
    wcopies = 1 if single_buf else 2

    # ---- parameter prep: gate columns permuted torch [i,f,g,o] -> [i,f,o,g],
    #      matmul weights cast to matmul_dtype (bf16 default -> MXU peak, half VMEM) ----
    perm = np.concatenate([np.arange(0, E), np.arange(E, 2 * E),
                           np.arange(3 * E, 4 * E), np.arange(2 * E, 3 * E)])
    w_ih = params["w_ih_t"][:, perm].astype(matmul_dtype)
    w_hh = params["w_hh_t"][:, perm].astype(matmul_dtype)
    b_lstm = params["b_lstm"][:, perm]
    fc_w = params["fc_w_t"].astype(matmul_dtype)
    pj_w = params["proj_w_t"].astype(matmul_dtype)

    # ---- layout: time-major rows, batch padded to a multiple of 8 -----------------------
    # TODO(synk): the in/out wrapper transposes could be absorbed into the kernels with
    # per-step strided slices; kept here because each costs one x-sized HBM pass vs. the
    # (now removed) 8x-larger gx round trip, and keeps the serial loop contiguous.
    x_tbe = jnp.transpose(x_bte, (1, 0, 2))                 # (T, B, E)
    if Bp != B:
        x_tbe = jnp.pad(x_tbe, ((0, 0), (0, Bp - B), (0, 0)))
    x_rows = x_tbe.reshape(rows, E)                         # contiguous, free reshape

    if hidden_in is None:
        h0 = jnp.zeros((Bp, E), jnp.float32)
        c0 = jnp.zeros((Bp, E), jnp.float32)
    else:
        h0 = hidden_in[0].reshape(B, E).astype(jnp.float32)
        c0 = hidden_in[1].reshape(B, E).astype(jnp.float32)
        if Bp != B:
            h0 = jnp.pad(h0, ((0, Bp - B), (0, 0)))
            c0 = jnp.pad(c0, ((0, Bp - B), (0, 0)))

    # =========================== pass 1: fused LN + LSTM scan ===========================
    per_t = Bp * 4 * (2 * E + 2 * E + H4)       # x in (2x) + h out (2x) + gate scratch
    Tc = _pick_t_chunk(T, per_t, chunk_budget)
    nt = T // Tc
    Rc = Tc * Bp

    est1 = (wcopies * 2 * E * H4 * wbytes       # W_ih^T, W_hh^T
            + 4 * Rc * E * 4                    # x block + h_all block (double buffered)
            + Rc * H4 * 4                       # gate scratch
            + 8 * Bp * E * 4                    # h0, c0, h_n, c_n (+ slack)
            + 4 * (2 * E + H4) * 4)             # LN params / bias

    h_all, h_n, c_n = pl.pallas_call(
        _lstm_scan_kernel,
        out_shape=(jax.ShapeDtypeStruct((rows, E), jnp.float32),
                   jax.ShapeDtypeStruct((Bp, E), jnp.float32),
                   jax.ShapeDtypeStruct((Bp, E), jnp.float32)),
        grid_spec=pltpu.PrefetchScalarGridSpec(
            num_scalar_prefetch=0, grid=(nt,),
            in_specs=[
                pl.BlockSpec((Rc, E), lambda i: (i, 0)),         # x rows (time-major)
                _const_spec((1, E), 1, single_buf),              # ln1 w
                _const_spec((1, E), 1, single_buf),              # ln1 b
                _const_spec((E, H4), 1, single_buf),             # W_ih^T [i|f|o|g]
                _const_spec((1, H4), 1, single_buf),             # b_ih + b_hh
                _const_spec((Bp, E), 1, single_buf),             # h0
                _const_spec((Bp, E), 1, single_buf),             # c0
                _const_spec((E, H4), 1, single_buf),             # W_hh^T [i|f|o|g]
            ],
            out_specs=(
                pl.BlockSpec((Rc, E), lambda i: (i, 0)),         # h sequence
                pl.BlockSpec((Bp, E), lambda i: (0, 0)),         # h_n (carry)
                pl.BlockSpec((Bp, E), lambda i: (0, 0)),         # c_n (carry)
            ),
            scratch_shapes=[pltpu.VMEM((Rc, H4), jnp.float32)]),
        compiler_params=pltpu.CompilerParams(
            dimension_semantics=("arbitrary",),
            vmem_limit_bytes=_vmem_limit_bytes(est1, cap)),
    )(x_rows, params["ln1_w"], params["ln1_b"], w_ih, b_lstm, h0, c0, w_hh)

    # ================= pass 2: residual + ln_2 + MLP (streamed 4E) + residual ===========
    Hc = _pick_hidden_chunk(H4, 2048 if big_vmem else 1024)
    nh = H4 // Hc
    per_row = E * 4 * 8 + Hc * 4                # x,h,z (2x each) + 2 scratches + hfc
    max_rows_eff = max(Bp, min(max_rows, chunk_budget // max(per_row, 1)))
    Rb = _pick_row_block(rows, Bp, max_rows_eff)
    nrb = rows // Rb

    est2 = (2 * 2 * E * Hc * wbytes             # fc / proj weight chunks (double buffered)
            + 4 * Rb * E * 4                    # x, h blocks (double buffered)
            + 2 * Rb * E * 4                    # z block (double buffered)
            + 2 * Rb * E * 4                    # yn / acc scratches
            + Rb * Hc * 4                       # hfc intermediate
            + 4 * (2 * E + Hc) * 4)

    z_rows = pl.pallas_call(
        _mlp_kernel,
        out_shape=jax.ShapeDtypeStruct((rows, E), x_bte.dtype),
        grid_spec=pltpu.PrefetchScalarGridSpec(
            num_scalar_prefetch=0, grid=(nrb, nh),
            in_specs=[
                pl.BlockSpec((Rb, E), lambda i, j: (i, 0)),      # x rows
                pl.BlockSpec((Rb, E), lambda i, j: (i, 0)),      # h rows
                _const_spec((1, E), 2, single_buf),              # ln2 w
                _const_spec((1, E), 2, single_buf),              # ln2 b
                pl.BlockSpec((E, Hc), lambda i, j: (0, j)),      # c_fc W^T chunk
                pl.BlockSpec((1, Hc), lambda i, j: (0, j)),      # c_fc b  chunk
                pl.BlockSpec((Hc, E), lambda i, j: (j, 0)),      # c_proj W^T chunk
                _const_spec((1, E), 2, single_buf),              # c_proj b
            ],
            out_specs=pl.BlockSpec((Rb, E), lambda i, j: (i, 0)),
            scratch_shapes=[pltpu.VMEM((Rb, E), jnp.float32),
                            pltpu.VMEM((Rb, E), jnp.float32)]),
        compiler_params=pltpu.CompilerParams(
            dimension_semantics=("parallel", "arbitrary"),
            vmem_limit_bytes=_vmem_limit_bytes(est2, cap)),
    )(x_rows, h_all, params["ln2_w"], params["ln2_b"],
      fc_w, params["fc_b"], pj_w, params["proj_b"])

    z = jnp.transpose(z_rows.reshape(T, Bp, E)[:, :B, :], (1, 0, 2))
    return z, (h_n[:B][None], c_n[:B][None])


# --------------------------------- pure-JAX reference -----------------------------------
def _reference(x_bte, params, hidden_in=None):
    B, T, E = x_bte.shape
    if hidden_in is None:
        h = jnp.zeros((B, E), jnp.float32)
        c = jnp.zeros((B, E), jnp.float32)
    else:
        h = hidden_in[0].reshape(B, E)
        c = hidden_in[1].reshape(B, E)

    with jax.default_matmul_precision("highest"):
        xn = _layer_norm(x_bte, params["ln1_w"][0], params["ln1_b"][0])

        def step(carry, x_t):
            h, c = carry
            gates = x_t @ params["w_ih_t"] + h @ params["w_hh_t"] + params["b_lstm"][0]
            i = jax.nn.sigmoid(gates[:, :E])
            f = jax.nn.sigmoid(gates[:, E:2 * E])
            g = jnp.tanh(gates[:, 2 * E:3 * E])
            o = jax.nn.sigmoid(gates[:, 3 * E:])
            c = f * c + i * g
            h = o * jnp.tanh(c)
            return (h, c), h

        (h_n, c_n), hs = lax.scan(step, (h, c), jnp.transpose(xn, (1, 0, 2)))
        y = x_bte + jnp.transpose(hs, (1, 0, 2))
        yn = _layer_norm(y, params["ln2_w"][0], params["ln2_b"][0])
        hid = yn @ params["fc_w_t"] + params["fc_b"][0]
        gelu = 0.5 * hid * (1.0 + lax.erf(hid * _INV_SQRT2))
        m = gelu @ params["proj_w_t"] + params["proj_b"][0]
        z = y + m
    return z, (h_n[None], c_n[None])


# --------------------------------------- params -----------------------------------------
def init_params(key, n_embd):
    E = n_embd
    ks = jax.random.split(key, 8)
    k_lstm = 1.0 / np.sqrt(E)
    k_fc = 1.0 / np.sqrt(E)
    k_pj = 1.0 / np.sqrt(4 * E)
    u = lambda k, shape, s: jax.random.uniform(k, shape, jnp.float32, -s, s)

    w_ih = u(ks[0], (4 * E, E), k_lstm)      # torch layout (4E, E), gate order [i,f,g,o]
    w_hh = u(ks[1], (4 * E, E), k_lstm)
    b_ih = u(ks[2], (4 * E,), k_lstm)
    b_hh = u(ks[3], (4 * E,), k_lstm)
    fc_w = u(ks[4], (4 * E, E), k_fc)        # nn.Linear(E, 4E).weight
    fc_b = u(ks[5], (4 * E,), k_fc)
    pj_w = u(ks[6], (E, 4 * E), k_pj)        # nn.Linear(4E, E).weight
    pj_b = u(ks[7], (E,), k_pj)

    return dict(
        ln1_w=jnp.ones((1, E), jnp.float32), ln1_b=jnp.zeros((1, E), jnp.float32),
        ln2_w=jnp.ones((1, E), jnp.float32), ln2_b=jnp.zeros((1, E), jnp.float32),
        w_ih_t=w_ih.T, w_hh_t=w_hh.T, b_lstm=(b_ih + b_hh)[None, :],
        fc_w_t=fc_w.T, fc_b=fc_b[None, :],
        proj_w_t=pj_w.T, proj_b=pj_b[None, :],
    )


if __name__ == "__main__":
    B, T, E = 2, 8, 32
    key = jax.random.PRNGKey(0)
    kx, kp, kh, kc = jax.random.split(key, 4)
    x = jax.random.normal(kx, (B, T, E), jnp.float32)
    params = init_params(kp, E)
    hidden_in = (jax.random.normal(kh, (1, B, E), jnp.float32),
                 jax.random.normal(kc, (1, B, E), jnp.float32))

    _single_buffer_consts_supported()        # warm the feature probe outside of tracing

    z_ref, (h_ref, c_ref) = _reference(x, params, hidden_in)

    # f32-matmul path: tight check
    fwd32 = jax.jit(functools.partial(recurrent_residual_block, params=params,
                                      hidden_in=hidden_in, matmul_dtype=jnp.float32))
    z, (h_n, c_n) = fwd32(x)
    jax.block_until_ready((z, h_n, c_n))
    np.testing.assert_allclose(np.asarray(z), np.asarray(z_ref), atol=5e-3, rtol=5e-3)
    np.testing.assert_allclose(np.asarray(h_n), np.asarray(h_ref), atol=5e-3, rtol=5e-3)
    np.testing.assert_allclose(np.asarray(c_n), np.asarray(c_ref), atol=5e-3, rtol=5e-3)

    # default bf16-matmul path (MXU peak): loose check
    fwd = jax.jit(functools.partial(recurrent_residual_block, params=params,
                                    hidden_in=hidden_in))
    zb, (hb, cb) = fwd(x)
    jax.block_until_ready((zb, hb, cb))
    np.testing.assert_allclose(np.asarray(zb), np.asarray(z_ref), atol=5e-2, rtol=5e-2)
    np.testing.assert_allclose(np.asarray(hb), np.asarray(h_ref), atol=5e-2, rtol=5e-2)
    np.testing.assert_allclose(np.asarray(cb), np.asarray(c_ref), atol=5e-2, rtol=5e-2)

    print("KERNEL_OK")
</pallas_src>

<mosaic_0001>
module attributes {stable_mosaic.version = 11 : i64} {
  func.func @_lstm_scan_kernel(%arg0: i32, %arg1: memref<64x32xf32, #tpu.memory_space<vmem>>, %arg2: memref<1x32xf32, #tpu.memory_space<vmem>>, %arg3: memref<1x32xf32, #tpu.memory_space<vmem>>, %arg4: memref<32x128xf32, #tpu.memory_space<vmem>>, %arg5: memref<1x128xf32, #tpu.memory_space<vmem>>, %arg6: memref<8x32xf32, #tpu.memory_space<vmem>>, %arg7: memref<8x32xf32, #tpu.memory_space<vmem>>, %arg8: memref<32x128xf32, #tpu.memory_space<vmem>>, %arg9: memref<64x32xf32, #tpu.memory_space<vmem>>, %arg10: memref<8x32xf32, #tpu.memory_space<vmem>>, %arg11: memref<8x32xf32, #tpu.memory_space<vmem>>, %arg12: memref<64x128xf32, #tpu.memory_space<vmem>>) attributes {dimension_semantics = [#tpu.dimension_semantics<arbitrary>], iteration_bounds = array<i64: 1>, scalar_prefetch = 0 : i64, scratch_operands = 1 : i64, tpu.core_type = #tpu.core_type<tc>, window_params = [{transform_indices = @transform_0, window_bounds = array<i64: 64, 32>}, {pipeline_mode = #tpu.pipeline_mode<synchronous>, transform_indices = @transform_1, window_bounds = array<i64: 1, 32>}, {pipeline_mode = #tpu.pipeline_mode<synchronous>, transform_indices = @transform_2, window_bounds = array<i64: 1, 32>}, {pipeline_mode = #tpu.pipeline_mode<synchronous>, transform_indices = @transform_3, window_bounds = array<i64: 32, 128>}, {pipeline_mode = #tpu.pipeline_mode<synchronous>, transform_indices = @transform_4, window_bounds = array<i64: 1, 128>}, {pipeline_mode = #tpu.pipeline_mode<synchronous>, transform_indices = @transform_5, window_bounds = array<i64: 8, 32>}, {pipeline_mode = #tpu.pipeline_mode<synchronous>, transform_indices = @transform_6, window_bounds = array<i64: 8, 32>}, {pipeline_mode = #tpu.pipeline_mode<synchronous>, transform_indices = @transform_7, window_bounds = array<i64: 32, 128>}, {transform_indices = @transform_8, window_bounds = array<i64: 64, 32>}, {pipeline_mode = #tpu.pipeline_mode<synchronous>, transform_indices = @transform_9, window_bounds = array<i64: 8, 32>}, {pipeline_mode = #tpu.pipeline_mode<synchronous>, transform_indices = @transform_10, window_bounds = array<i64: 8, 32>}]} {
    %c0_i32 = arith.constant 0 : i32
    %0 = arith.cmpi eq, %arg0, %c0_i32 : i32
    %1 = arith.extui %0 : i1 to i32
    %c0_i32_0 = arith.constant 0 : i32
    %2 = arith.cmpi ne, %1, %c0_i32_0 : i32
    scf.if %2 {
      %c0_84 = arith.constant 0 : index
      %c0_85 = arith.constant 0 : index
      %247 = vector.load %arg6[%c0_84, %c0_85] : memref<8x32xf32, #tpu.memory_space<vmem>>, vector<8x32xf32>
      %c0_86 = arith.constant 0 : index
      %c0_87 = arith.constant 0 : index
      %248 = vector.load %arg10[%c0_86, %c0_87] : memref<8x32xf32, #tpu.memory_space<vmem>>, vector<8x32xf32>
      tpu.vector_store %arg10[%c0_86, %c0_87], %247 {strides = array<i32>} : memref<8x32xf32, #tpu.memory_space<vmem>>, vector<8x32xf32>,
      %c0_88 = arith.constant 0 : index
      %c0_89 = arith.constant 0 : index
      %249 = vector.load %arg7[%c0_88, %c0_89] : memref<8x32xf32, #tpu.memory_space<vmem>>, vector<8x32xf32>
      %c0_90 = arith.constant 0 : index
      %c0_91 = arith.constant 0 : index
      %250 = vector.load %arg11[%c0_90, %c0_91] : memref<8x32xf32, #tpu.memory_space<vmem>>, vector<8x32xf32>
      tpu.vector_store %arg11[%c0_90, %c0_91], %249 {strides = array<i32>} : memref<8x32xf32, #tpu.memory_space<vmem>>, vector<8x32xf32>,
    } else {
    }
    %c0 = arith.constant 0 : index
    %c0_1 = arith.constant 0 : index
    %3 = vector.load %arg1[%c0, %c0_1] : memref<64x32xf32, #tpu.memory_space<vmem>>, vector<64x32xf32>
    %c0_2 = arith.constant 0 : index
    %c0_3 = arith.constant 0 : index
    %4 = vector.load %arg2[%c0_2, %c0_3] : memref<1x32xf32, #tpu.memory_space<vmem>>, vector<1x32xf32>
    %c0_4 = arith.constant 0 : index
    %c0_5 = arith.constant 0 : index
    %5 = vector.load %arg3[%c0_4, %c0_5] : memref<1x32xf32, #tpu.memory_space<vmem>>, vector<1x32xf32>
    %cst = arith.constant dense<0.000000e+00> : vector<64xf32>
    %6 = vector.multi_reduction <add>, %3, %cst [1] : vector<64x32xf32> to vector<64xf32>
    %7 = vector.shape_cast %6 : vector<64xf32> to vector<64x1xf32>
    %cst_6 = arith.constant 3.200000e+01 : f32
    %8 = vector.broadcast %cst_6 : f32 to vector<64x1xf32>
    %9 = arith.divf %7, %8 : vector<64x1xf32>
    %10 = vector.broadcast %9 : vector<64x1xf32> to vector<64x32xf32>
    %11 = arith.subf %3, %10 : vector<64x32xf32>
    %12 = arith.mulf %11, %11 : vector<64x32xf32>
    %cst_7 = arith.constant dense<0.000000e+00> : vector<64xf32>
    %13 = vector.multi_reduction <add>, %12, %cst_7 [1] : vector<64x32xf32> to vector<64xf32>
    %14 = vector.shape_cast %13 : vector<64xf32> to vector<64x1xf32>
    %cst_8 = arith.constant 3.200000e+01 : f32
    %15 = vector.broadcast %cst_8 : f32 to vector<64x1xf32>
    %16 = arith.divf %14, %15 : vector<64x1xf32>
    %17 = vector.broadcast %9 : vector<64x1xf32> to vector<64x32xf32>
    %18 = arith.subf %3, %17 : vector<64x32xf32>
    %cst_9 = arith.constant 9.99999974E-6 : f32
    %19 = vector.broadcast %cst_9 : f32 to vector<64x1xf32>
    %20 = arith.addf %16, %19 : vector<64x1xf32>
    %21 = math.rsqrt %20 : vector<64x1xf32>
    %22 = vector.broadcast %21 : vector<64x1xf32> to vector<64x32xf32>
    %23 = arith.mulf %18, %22 : vector<64x32xf32>
    %24 = vector.broadcast %4 : vector<1x32xf32> to vector<64x32xf32>
    %25 = arith.mulf %23, %24 : vector<64x32xf32>
    %26 = vector.broadcast %5 : vector<1x32xf32> to vector<64x32xf32>
    %27 = arith.addf %25, %26 : vector<64x32xf32>
    %c0_10 = arith.constant 0 : index
    %c0_11 = arith.constant 0 : index
    %28 = vector.load %arg4[%c0_10, %c0_11] : memref<32x128xf32, #tpu.memory_space<vmem>>, vector<32x128xf32>
    %cst_12 = arith.constant dense<0.000000e+00> : vector<64x128xf32>
    %29 = tpu.matmul %27, %28, %cst_12 {dimension_numbers = #tpu.dot_dimension_numbers<[1], [0], [0], [1], [0, 0, 1, 1], [], []>} : vector<64x32xf32>, vector<32x128xf32>, vector<64x128xf32> -> vector<64x128xf32>
    %c0_13 = arith.constant 0 : index
    %c0_14 = arith.constant 0 : index
    %30 = vector.load %arg5[%c0_13, %c0_14] : memref<1x128xf32, #tpu.memory_space<vmem>>, vector<1x128xf32>
    %31 = vector.broadcast %30 : vector<1x128xf32> to vector<64x128xf32>
    %32 = arith.addf %29, %31 : vector<64x128xf32>
    %c0_15 = arith.constant 0 : index
    %c0_16 = arith.constant 0 : index
    %33 = vector.load %arg12[%c0_15, %c0_16] : memref<64x128xf32, #tpu.memory_space<vmem>>, vector<64x128xf32>
    tpu.vector_store %arg12[%c0_15, %c0_16], %32 {strides = array<i32>} : memref<64x128xf32, #tpu.memory_space<vmem>>, vector<64x128xf32>,
    %c0_17 = arith.constant 0 : index
    %c0_18 = arith.constant 0 : index
    %34 = vector.load %arg8[%c0_17, %c0_18] : memref<32x128xf32, #tpu.memory_space<vmem>>, vector<32x128xf32>
    %c0_19 = arith.constant 0 : index
    %c0_20 = arith.constant 0 : index
    %35 = vector.load %arg10[%c0_19, %c0_20] : memref<8x32xf32, #tpu.memory_space<vmem>>, vector<8x32xf32>
    %c0_21 = arith.constant 0 : index
    %c0_22 = arith.constant 0 : index
    %36 = vector.load %arg11[%c0_21, %c0_22] : memref<8x32xf32, #tpu.memory_space<vmem>>, vector<8x32xf32>
    %c0_i32_23 = arith.constant 0 : i32
    %c8_i32 = arith.constant 8 : i32
    %37 = arith.muli %c0_i32_23, %c8_i32 : i32
    %38 = tpu.assume_multiple %37, 8 : i32
    %39 = arith.index_cast %38 : i32 to index
    %c0_24 = arith.constant 0 : index
    %40 = vector.load %arg12[%39, %c0_24] : memref<64x128xf32, #tpu.memory_space<vmem>>, vector<8x128xf32>
    %cst_25 = arith.constant dense<0.000000e+00> : vector<8x128xf32>
    %41 = tpu.matmul %35, %34, %cst_25 {dimension_numbers = #tpu.dot_dimension_numbers<[1], [0], [0], [1], [0, 0, 1, 1], [], []>} : vector<8x32xf32>, vector<32x128xf32>, vector<8x128xf32> -> vector<8x128xf32>
    %42 = arith.addf %40, %41 : vector<8x128xf32>
    %43 = vector.extract_strided_slice %42 {offsets = [0, 0], sizes = [8, 96], strides = [1, 1]} : vector<8x128xf32> to vector<8x96xf32>
    %cst_26 = arith.constant 0.000000e+00 : f32
    %44 = vector.broadcast %cst_26 : f32 to vector<8x96xf32>
    %45 = arith.subf %44, %43 : vector<8x96xf32>
    %46 = math.exp %45 : vector<8x96xf32>
    %cst_27 = arith.constant 1.000000e+00 : f32
    %47 = vector.broadcast %cst_27 : f32 to vector<8x96xf32>
    %48 = arith.addf %47, %46 : vector<8x96xf32>
    %cst_28 = arith.constant 1.000000e+00 : f32
    %49 = vector.broadcast %cst_28 : f32 to vector<8x96xf32>
    %50 = arith.divf %49, %48 : vector<8x96xf32>
    %51 = vector.extract_strided_slice %50 {offsets = [0, 0], sizes = [8, 32], strides = [1, 1]} : vector<8x96xf32> to vector<8x32xf32>
    %52 = vector.extract_strided_slice %50 {offsets = [0, 32], sizes = [8, 32], strides = [1, 1]} : vector<8x96xf32> to vector<8x32xf32>
    %53 = vector.extract_strided_slice %50 {offsets = [0, 64], sizes = [8, 32], strides = [1, 1]} : vector<8x96xf32> to vector<8x32xf32>
    %54 = vector.extract_strided_slice %42 {offsets = [0, 96], sizes = [8, 32], strides = [1, 1]} : vector<8x128xf32> to vector<8x32xf32>
    %55 = math.tanh %54 : vector<8x32xf32>
    %56 = arith.mulf %52, %36 : vector<8x32xf32>
    %57 = arith.mulf %51, %55 : vector<8x32xf32>
    %58 = arith.addf %56, %57 : vector<8x32xf32>
    %59 = math.tanh %58 : vector<8x32xf32>
    %60 = arith.mulf %53, %59 : vector<8x32xf32>
    %61 = arith.index_cast %38 : i32 to index
    %c0_29 = arith.constant 0 : index
    %62 = vector.load %arg9[%61, %c0_29] : memref<64x32xf32, #tpu.memory_space<vmem>>, vector<8x32xf32>
    tpu.vector_store %arg9[%61, %c0_29], %60 {strides = array<i32>} : memref<64x32xf32, #tpu.memory_space<vmem>>, vector<8x32xf32>,
    %c1_i32 = arith.constant 1 : i32
    %c8_i32_30 = arith.constant 8 : i32
    %63 = arith.muli %c1_i32, %c8_i32_30 : i32
    %64 = tpu.assume_multiple %63, 8 : i32
    %65 = arith.index_cast %64 : i32 to index
    %c0_31 = arith.constant 0 : index
    %66 = vector.load %arg12[%65, %c0_31] : memref<64x128xf32, #tpu.memory_space<vmem>>, vector<8x128xf32>
    %cst_32 = arith.constant dense<0.000000e+00> : vector<8x128xf32>
    %67 = tpu.matmul %60, %34, %cst_32 {dimension_numbers = #tpu.dot_dimension_numbers<[1], [0], [0], [1], [0, 0, 1, 1], [], []>} : vector<8x32xf32>, vector<32x128xf32>, vector<8x128xf32> -> vector<8x128xf32>
    %68 = arith.addf %66, %67 : vector<8x128xf32>
    %69 = vector.extract_strided_slice %68 {offsets = [0, 0], sizes = [8, 96], strides = [1, 1]} : vector<8x128xf32> to vector<8x96xf32>
    %cst_33 = arith.constant 0.000000e+00 : f32
    %70 = vector.broadcast %cst_33 : f32 to vector<8x96xf32>
    %71 = arith.subf %70, %69 : vector<8x96xf32>
    %72 = math.exp %71 : vector<8x96xf32>
    %cst_34 = arith.constant 1.000000e+00 : f32
    %73 = vector.broadcast %cst_34 : f32 to vector<8x96xf32>
    %74 = arith.addf %73, %72 : vector<8x96xf32>
    %cst_35 = arith.constant 1.000000e+00 : f32
    %75 = vector.broadcast %cst_35 : f32 to vector<8x96xf32>
    %76 = arith.divf %75, %74 : vector<8x96xf32>
    %77 = vector.extract_strided_slice %76 {offsets = [0, 0], sizes = [8, 32], strides = [1, 1]} : vector<8x96xf32> to vector<8x32xf32>
    %78 = vector.extract_strided_slice %76 {offsets = [0, 32], sizes = [8, 32], strides = [1, 1]} : vector<8x96xf32> to vector<8x32xf32>
    %79 = vector.extract_strided_slice %76 {offsets = [0, 64], sizes = [8, 32], strides = [1, 1]} : vector<8x96xf32> to vector<8x32xf32>
    %80 = vector.extract_strided_slice %68 {offsets = [0, 96], sizes = [8, 32], strides = [1, 1]} : vector<8x128xf32> to vector<8x32xf32>
    %81 = math.tanh %80 : vector<8x32xf32>
    %82 = arith.mulf %78, %58 : vector<8x32xf32>
    %83 = arith.mulf %77, %81 : vector<8x32xf32>
    %84 = arith.addf %82, %83 : vector<8x32xf32>
    %85 = math.tanh %84 : vector<8x32xf32>
    %86 = arith.mulf %79, %85 : vector<8x32xf32>
    %87 = arith.index_cast %64 : i32 to index
    %c0_36 = arith.constant 0 : index
    %88 = vector.load %arg9[%87, %c0_36] : memref<64x32xf32, #tpu.memory_space<vmem>>, vector<8x32xf32>
    tpu.vector_store %arg9[%87, %c0_36], %86 {strides = array<i32>} : memref<64x32xf32, #tpu.memory_space<vmem>>, vector<8x32xf32>,
    %c2_i32 = arith.constant 2 : i32
    %c8_i32_37 = arith.constant 8 : i32
    %89 = arith.muli %c2_i32, %c8_i32_37 : i32
    %90 = tpu.assume_multiple %89, 8 : i32
    %91 = arith.index_cast %90 : i32 to index
    %c0_38 = arith.constant 0 : index
    %92 = vector.load %arg12[%91, %c0_38] : memref<64x128xf32, #tpu.memory_space<vmem>>, vector<8x128xf32>
    %cst_39 = arith.constant dense<0.000000e+00> : vector<8x128xf32>
    %93 = tpu.matmul %86, %34, %cst_39 {dimension_numbers = #tpu.dot_dimension_numbers<[1], [0], [0], [1], [0, 0, 1, 1], [], []>} : vector<8x32xf32>, vector<32x128xf32>, vector<8x128xf32> -> vector<8x128xf32>
    %94 = arith.addf %92, %93 : vector<8x128xf32>
    %95 = vector.extract_strided_slice %94 {offsets = [0, 0], sizes = [8, 96], strides = [1, 1]} : vector<8x128xf32> to vector<8x96xf32>
    %cst_40 = arith.constant 0.000000e+00 : f32
    %96 = vector.broadcast %cst_40 : f32 to vector<8x96xf32>
    %97 = arith.subf %96, %95 : vector<8x96xf32>
    %98 = math.exp %97 : vector<8x96xf32>
    %cst_41 = arith.constant 1.000000e+00 : f32
    %99 = vector.broadcast %cst_41 : f32 to vector<8x96xf32>
    %100 = arith.addf %99, %98 : vector<8x96xf32>
    %cst_42 = arith.constant 1.000000e+00 : f32
    %101 = vector.broadcast %cst_42 : f32 to vector<8x96xf32>
    %102 = arith.divf %101, %100 : vector<8x96xf32>
    %103 = vector.extract_strided_slice %102 {offsets = [0, 0], sizes = [8, 32], strides = [1, 1]} : vector<8x96xf32> to vector<8x32xf32>
    %104 = vector.extract_strided_slice %102 {offsets = [0, 32], sizes = [8, 32], strides = [1, 1]} : vector<8x96xf32> to vector<8x32xf32>
    %105 = vector.extract_strided_slice %102 {offsets = [0, 64], sizes = [8, 32], strides = [1, 1]} : vector<8x96xf32> to vector<8x32xf32>
    %106 = vector.extract_strided_slice %94 {offsets = [0, 96], sizes = [8, 32], strides = [1, 1]} : vector<8x128xf32> to vector<8x32xf32>
    %107 = math.tanh %106 : vector<8x32xf32>
    %108 = arith.mulf %104, %84 : vector<8x32xf32>
    %109 = arith.mulf %103, %107 : vector<8x32xf32>
    %110 = arith.addf %108, %109 : vector<8x32xf32>
    %111 = math.tanh %110 : vector<8x32xf32>
    %112 = arith.mulf %105, %111 : vector<8x32xf32>
    %113 = arith.index_cast %90 : i32 to index
    %c0_43 = arith.constant 0 : index
    %114 = vector.load %arg9[%113, %c0_43] : memref<64x32xf32, #tpu.memory_space<vmem>>, vector<8x32xf32>
    tpu.vector_store %arg9[%113, %c0_43], %112 {strides = array<i32>} : memref<64x32xf32, #tpu.memory_space<vmem>>, vector<8x32xf32>,
    %c3_i32 = arith.constant 3 : i32
    %c8_i32_44 = arith.constant 8 : i32
    %115 = arith.muli %c3_i32, %c8_i32_44 : i32
    %116 = tpu.assume_multiple %115, 8 : i32
    %117 = arith.index_cast %116 : i32 to index
    %c0_45 = arith.constant 0 : index
    %118 = vector.load %arg12[%117, %c0_45] : memref<64x128xf32, #tpu.memory_space<vmem>>, vector<8x128xf32>
    %cst_46 = arith.constant dense<0.000000e+00> : vector<8x128xf32>
    %119 = tpu.matmul %112, %34, %cst_46 {dimension_numbers = #tpu.dot_dimension_numbers<[1], [0], [0], [1], [0, 0, 1, 1], [], []>} : vector<8x32xf32>, vector<32x128xf32>, vector<8x128xf32> -> vector<8x128xf32>
    %120 = arith.addf %118, %119 : vector<8x128xf32>
    %121 = vector.extract_strided_slice %120 {offsets = [0, 0], sizes = [8, 96], strides = [1, 1]} : vector<8x128xf32> to vector<8x96xf32>
    %cst_47 = arith.constant 0.000000e+00 : f32
    %122 = vector.broadcast %cst_47 : f32 to vector<8x96xf32>
    %123 = arith.subf %122, %121 : vector<8x96xf32>
    %124 = math.exp %123 : vector<8x96xf32>
    %cst_48 = arith.constant 1.000000e+00 : f32
    %125 = vector.broadcast %cst_48 : f32 to vector<8x96xf32>
    %126 = arith.addf %125, %124 : vector<8x96xf32>
    %cst_49 = arith.constant 1.000000e+00 : f32
    %127 = vector.broadcast %cst_49 : f32 to vector<8x96xf32>
    %128 = arith.divf %127, %126 : vector<8x96xf32>
    %129 = vector.extract_strided_slice %128 {offsets = [0, 0], sizes = [8, 32], strides = [1, 1]} : vector<8x96xf32> to vector<8x32xf32>
    %130 = vector.extract_strided_slice %128 {offsets = [0, 32], sizes = [8, 32], strides = [1, 1]} : vector<8x96xf32> to vector<8x32xf32>
    %131 = vector.extract_strided_slice %128 {offsets = [0, 64], sizes = [8, 32], strides = [1, 1]} : vector<8x96xf32> to vector<8x32xf32>
    %132 = vector.extract_strided_slice %120 {offsets = [0, 96], sizes = [8, 32], strides = [1, 1]} : vector<8x128xf32> to vector<8x32xf32>
    %133 = math.tanh %132 : vector<8x32xf32>
    %134 = arith.mulf %130, %110 : vector<8x32xf32>
    %135 = arith.mulf %129, %133 : vector<8x32xf32>
    %136 = arith.addf %134, %135 : vector<8x32xf32>
    %137 = math.tanh %136 : vector<8x32xf32>
    %138 = arith.mulf %131, %137 : vector<8x32xf32>
    %139 = arith.index_cast %116 : i32 to index
    %c0_50 = arith.constant 0 : index
    %140 = vector.load %arg9[%139, %c0_50] : memref<64x32xf32, #tpu.memory_space<vmem>>, vector<8x32xf32>
    tpu.vector_store %arg9[%139, %c0_50], %138 {strides = array<i32>} : memref<64x32xf32, #tpu.memory_space<vmem>>, vector<8x32xf32>,
    %c4_i32 = arith.constant 4 : i32
    %c8_i32_51 = arith.constant 8 : i32
    %141 = arith.muli %c4_i32, %c8_i32_51 : i32
    %142 = tpu.assume_multiple %141, 8 : i32
    %143 = arith.index_cast %142 : i32 to index
    %c0_52 = arith.constant 0 : index
    %144 = vector.load %arg12[%143, %c0_52] : memref<64x128xf32, #tpu.memory_space<vmem>>, vector<8x128xf32>
    %cst_53 = arith.constant dense<0.000000e+00> : vector<8x128xf32>
    %145 = tpu.matmul %138, %34, %cst_53 {dimension_numbers = #tpu.dot_dimension_numbers<[1], [0], [0], [1], [0, 0, 1, 1], [], []>} : vector<8x32xf32>, vector<32x128xf32>, vector<8x128xf32> -> vector<8x128xf32>
    %146 = arith.addf %144, %145 : vector<8x128xf32>
    %147 = vector.extract_strided_slice %146 {offsets = [0, 0], sizes = [8, 96], strides = [1, 1]} : vector<8x128xf32> to vector<8x96xf32>
    %cst_54 = arith.constant 0.000000e+00 : f32
    %148 = vector.broadcast %cst_54 : f32 to vector<8x96xf32>
    %149 = arith.subf %148, %147 : vector<8x96xf32>
    %150 = math.exp %149 : vector<8x96xf32>
    %cst_55 = arith.constant 1.000000e+00 : f32
    %151 = vector.broadcast %cst_55 : f32 to vector<8x96xf32>
    %152 = arith.addf %151, %150 : vector<8x96xf32>
    %cst_56 = arith.constant 1.000000e+00 : f32
    %153 = vector.broadcast %cst_56 : f32 to vector<8x96xf32>
    %154 = arith.divf %153, %152 : vector<8x96xf32>
    %155 = vector.extract_strided_slice %154 {offsets = [0, 0], sizes = [8, 32], strides = [1, 1]} : vector<8x96xf32> to vector<8x32xf32>
    %156 = vector.extract_strided_slice %154 {offsets = [0, 32], sizes = [8, 32], strides = [1, 1]} : vector<8x96xf32> to vector<8x32xf32>
    %157 = vector.extract_strided_slice %154 {offsets = [0, 64], sizes = [8, 32], strides = [1, 1]} : vector<8x96xf32> to vector<8x32xf32>
    %158 = vector.extract_strided_slice %146 {offsets = [0, 96], sizes = [8, 32], strides = [1, 1]} : vector<8x128xf32> to vector<8x32xf32>
    %159 = math.tanh %158 : vector<8x32xf32>
    %160 = arith.mulf %156, %136 : vector<8x32xf32>
    %161 = arith.mulf %155, %159 : vector<8x32xf32>
    %162 = arith.addf %160, %161 : vector<8x32xf32>
    %163 = math.tanh %162 : vector<8x32xf32>
    %164 = arith.mulf %157, %163 : vector<8x32xf32>
    %165 = arith.index_cast %142 : i32 to index
    %c0_57 = arith.constant 0 : index
    %166 = vector.load %arg9[%165, %c0_57] : memref<64x32xf32, #tpu.memory_space<vmem>>, vector<8x32xf32>
    tpu.vector_store %arg9[%165, %c0_57], %164 {strides = array<i32>} : memref<64x32xf32, #tpu.memory_space<vmem>>, vector<8x32xf32>,
    %c5_i32 = arith.constant 5 : i32
    %c8_i32_58 = arith.constant 8 : i32
    %167 = arith.muli %c5_i32, %c8_i32_58 : i32
    %168 = tpu.assume_multiple %167, 8 : i32
    %169 = arith.index_cast %168 : i32 to index
    %c0_59 = arith.constant 0 : index
    %170 = vector.load %arg12[%169, %c0_59] : memref<64x128xf32, #tpu.memory_space<vmem>>, vector<8x128xf32>
    %cst_60 = arith.constant dense<0.000000e+00> : vector<8x128xf32>
    %171 = tpu.matmul %164, %34, %cst_60 {dimension_numbers = #tpu.dot_dimension_numbers<[1], [0], [0], [1], [0, 0, 1, 1], [], []>} : vector<8x32xf32>, vector<32x128xf32>, vector<8x128xf32> -> vector<8x128xf32>
    %172 = arith.addf %170, %171 : vector<8x128xf32>
    %173 = vector.extract_strided_slice %172 {offsets = [0, 0], sizes = [8, 96], strides = [1, 1]} : vector<8x128xf32> to vector<8x96xf32>
    %cst_61 = arith.constant 0.000000e+00 : f32
    %174 = vector.broadcast %cst_61 : f32 to vector<8x96xf32>
    %175 = arith.subf %174, %173 : vector<8x96xf32>
    %176 = math.exp %175 : vector<8x96xf32>
    %cst_62 = arith.constant 1.000000e+00 : f32
    %177 = vector.broadcast %cst_62 : f32 to vector<8x96xf32>
    %178 = arith.addf %177, %176 : vector<8x96xf32>
    %cst_63 = arith.constant 1.000000e+00 : f32
    %179 = vector.broadcast %cst_63 : f32 to vector<8x96xf32>
    %180 = arith.divf %179, %178 : vector<8x96xf32>
    %181 = vector.extract_strided_slice %180 {offsets = [0, 0], sizes = [8, 32], strides = [1, 1]} : vector<8x96xf32> to vector<8x32xf32>
    %182 = vector.extract_strided_slice %180 {offsets = [0, 32], sizes = [8, 32], strides = [1, 1]} : vector<8x96xf32> to vector<8x32xf32>
    %183 = vector.extract_strided_slice %180 {offsets = [0, 64], sizes = [8, 32], strides = [1, 1]} : vector<8x96xf32> to vector<8x32xf32>
    %184 = vector.extract_strided_slice %172 {offsets = [0, 96], sizes = [8, 32], strides = [1, 1]} : vector<8x128xf32> to vector<8x32xf32>
    %185 = math.tanh %184 : vector<8x32xf32>
    %186 = arith.mulf %182, %162 : vector<8x32xf32>
    %187 = arith.mulf %181, %185 : vector<8x32xf32>
    %188 = arith.addf %186, %187 : vector<8x32xf32>
    %189 = math.tanh %188 : vector<8x32xf32>
    %190 = arith.mulf %183, %189 : vector<8x32xf32>
    %191 = arith.index_cast %168 : i32 to index
    %c0_64 = arith.constant 0 : index
    %192 = vector.load %arg9[%191, %c0_64] : memref<64x32xf32, #tpu.memory_space<vmem>>, vector<8x32xf32>
    tpu.vector_store %arg9[%191, %c0_64], %190 {strides = array<i32>} : memref<64x32xf32, #tpu.memory_space<vmem>>, vector<8x32xf32>,
    %c6_i32 = arith.constant 6 : i32
    %c8_i32_65 = arith.constant 8 : i32
    %193 = arith.muli %c6_i32, %c8_i32_65 : i32
    %194 = tpu.assume_multiple %193, 8 : i32
    %195 = arith.index_cast %194 : i32 to index
    %c0_66 = arith.constant 0 : index
    %196 = vector.load %arg12[%195, %c0_66] : memref<64x128xf32, #tpu.memory_space<vmem>>, vector<8x128xf32>
    %cst_67 = arith.constant dense<0.000000e+00> : vector<8x128xf32>
    %197 = tpu.matmul %190, %34, %cst_67 {dimension_numbers = #tpu.dot_dimension_numbers<[1], [0], [0], [1], [0, 0, 1, 1], [], []>} : vector<8x32xf32>, vector<32x128xf32>, vector<8x128xf32> -> vector<8x128xf32>
    %198 = arith.addf %196, %197 : vector<8x128xf32>
    %199 = vector.extract_strided_slice %198 {offsets = [0, 0], sizes = [8, 96], strides = [1, 1]} : vector<8x128xf32> to vector<8x96xf32>
    %cst_68 = arith.constant 0.000000e+00 : f32
    %200 = vector.broadcast %cst_68 : f32 to vector<8x96xf32>
    %201 = arith.subf %200, %199 : vector<8x96xf32>
    %202 = math.exp %201 : vector<8x96xf32>
    %cst_69 = arith.constant 1.000000e+00 : f32
    %203 = vector.broadcast %cst_69 : f32 to vector<8x96xf32>
    %204 = arith.addf %203, %202 : vector<8x96xf32>
    %cst_70 = arith.constant 1.000000e+00 : f32
    %205 = vector.broadcast %cst_70 : f32 to vector<8x96xf32>
    %206 = arith.divf %205, %204 : vector<8x96xf32>
    %207 = vector.extract_strided_slice %206 {offsets = [0, 0], sizes = [8, 32], strides = [1, 1]} : vector<8x96xf32> to vector<8x32xf32>
    %208 = vector.extract_strided_slice %206 {offsets = [0, 32], sizes = [8, 32], strides = [1, 1]} : vector<8x96xf32> to vector<8x32xf32>
    %209 = vector.extract_strided_slice %206 {offsets = [0, 64], sizes = [8, 32], strides = [1, 1]} : vector<8x96xf32> to vector<8x32xf32>
    %210 = vector.extract_strided_slice %198 {offsets = [0, 96], sizes = [8, 32], strides = [1, 1]} : vector<8x128xf32> to vector<8x32xf32>
    %211 = math.tanh %210 : vector<8x32xf32>
    %212 = arith.mulf %208, %188 : vector<8x32xf32>
    %213 = arith.mulf %207, %211 : vector<8x32xf32>
    %214 = arith.addf %212, %213 : vector<8x32xf32>
    %215 = math.tanh %214 : vector<8x32xf32>
    %216 = arith.mulf %209, %215 : vector<8x32xf32>
    %217 = arith.index_cast %194 : i32 to index
    %c0_71 = arith.constant 0 : index
    %218 = vector.load %arg9[%217, %c0_71] : memref<64x32xf32, #tpu.memory_space<vmem>>, vector<8x32xf32>
    tpu.vector_store %arg9[%217, %c0_71], %216 {strides = array<i32>} : memref<64x32xf32, #tpu.memory_space<vmem>>, vector<8x32xf32>,
    %c7_i32 = arith.constant 7 : i32
    %c8_i32_72 = arith.constant 8 : i32
    %219 = arith.muli %c7_i32, %c8_i32_72 : i32
    %220 = tpu.assume_multiple %219, 8 : i32
    %221 = arith.index_cast %220 : i32 to index
    %c0_73 = arith.constant 0 : index
    %222 = vector.load %arg12[%221, %c0_73] : memref<64x128xf32, #tpu.memory_space<vmem>>, vector<8x128xf32>
    %cst_74 = arith.constant dense<0.000000e+00> : vector<8x128xf32>
    %223 = tpu.matmul %216, %34, %cst_74 {dimension_numbers = #tpu.dot_dimension_numbers<[1], [0], [0], [1], [0, 0, 1, 1], [], []>} : vector<8x32xf32>, vector<32x128xf32>, vector<8x128xf32> -> vector<8x128xf32>
    %224 = arith.addf %222, %223 : vector<8x128xf32>
    %225 = vector.extract_strided_slice %224 {offsets = [0, 0], sizes = [8, 96], strides = [1, 1]} : vector<8x128xf32> to vector<8x96xf32>
    %cst_75 = arith.constant 0.000000e+00 : f32
    %226 = vector.broadcast %cst_75 : f32 to vector<8x96xf32>
    %227 = arith.subf %226, %225 : vector<8x96xf32>
    %228 = math.exp %227 : vector<8x96xf32>
    %cst_76 = arith.constant 1.000000e+00 : f32
    %229 = vector.broadcast %cst_76 : f32 to vector<8x96xf32>
    %230 = arith.addf %229, %228 : vector<8x96xf32>
    %cst_77 = arith.constant 1.000000e+00 : f32
    %231 = vector.broadcast %cst_77 : f32 to vector<8x96xf32>
    %232 = arith.divf %231, %230 : vector<8x96xf32>
    %233 = vector.extract_strided_slice %232 {offsets = [0, 0], sizes = [8, 32], strides = [1, 1]} : vector<8x96xf32> to vector<8x32xf32>
    %234 = vector.extract_strided_slice %232 {offsets = [0, 32], sizes = [8, 32], strides = [1, 1]} : vector<8x96xf32> to vector<8x32xf32>
    %235 = vector.extract_strided_slice %232 {offsets = [0, 64], sizes = [8, 32], strides = [1, 1]} : vector<8x96xf32> to vector<8x32xf32>
    %236 = vector.extract_strided_slice %224 {offsets = [0, 96], sizes = [8, 32], strides = [1, 1]} : vector<8x128xf32> to vector<8x32xf32>
    %237 = math.tanh %236 : vector<8x32xf32>
    %238 = arith.mulf %234, %214 : vector<8x32xf32>
    %239 = arith.mulf %233, %237 : vector<8x32xf32>
    %240 = arith.addf %238, %239 : vector<8x32xf32>
    %241 = math.tanh %240 : vector<8x32xf32>
    %242 = arith.mulf %235, %241 : vector<8x32xf32>
    %243 = arith.index_cast %220 : i32 to index
    %c0_78 = arith.constant 0 : index
    %244 = vector.load %arg9[%243, %c0_78] : memref<64x32xf32, #tpu.memory_space<vmem>>, vector<8x32xf32>
    tpu.vector_store %arg9[%243, %c0_78], %242 {strides = array<i32>} : memref<64x32xf32, #tpu.memory_space<vmem>>, vector<8x32xf32>,
    %c8_i32_79 = arith.constant 8 : i32
    %c0_80 = arith.constant 0 : index
    %c0_81 = arith.constant 0 : index
    %245 = vector.load %arg10[%c0_80, %c0_81] : memref<8x32xf32, #tpu.memory_space<vmem>>, vector<8x32xf32>
    tpu.vector_store %arg10[%c0_80, %c0_81], %242 {strides = array<i32>} : memref<8x32xf32, #tpu.memory_space<vmem>>, vector<8x32xf32>,
    %c0_82 = arith.constant 0 : index
    %c0_83 = arith.constant 0 : index
    %246 = vector.load %arg11[%c0_82, %c0_83] : memref<8x32xf32, #tpu.memory_space<vmem>>, vector<8x32xf32>
    tpu.vector_store %arg11[%c0_82, %c0_83], %240 {strides = array<i32>} : memref<8x32xf32, #tpu.memory_space<vmem>>, vector<8x32xf32>,
    return
  }
  func.func @transform_0(%arg0: i32) -> (i32, i32) {
    %c0_i32 = arith.constant 0 : i32
    %c0_i32_0 = arith.constant 0 : i32
    return %arg0, %c0_i32 : i32, i32
  }
  func.func @transform_1(%arg0: i32) -> (i32, i32) {
    %c0_i32 = arith.constant 0 : i32
    %c0_i32_0 = arith.constant 0 : i32
    %c0_i32_1 = arith.constant 0 : i32
    return %c0_i32, %c0_i32_0 : i32, i32
  }
  func.func @transform_2(%arg0: i32) -> (i32, i32) {
    %c0_i32 = arith.constant 0 : i32
    %c0_i32_0 = arith.constant 0 : i32
    %c0_i32_1 = arith.constant 0 : i32
    return %c0_i32, %c0_i32_0 : i32, i32
  }
  func.func @transform_3(%arg0: i32) -> (i32, i32) {
    %c0_i32 = arith.constant 0 : i32
    %c0_i32_0 = arith.constant 0 : i32
    %c0_i32_1 = arith.constant 0 : i32
    return %c0_i32, %c0_i32_0 : i32, i32
  }
  func.func @transform_4(%arg0: i32) -> (i32, i32) {
    %c0_i32 = arith.constant 0 : i32
    %c0_i32_0 = arith.constant 0 : i32
    %c0_i32_1 = arith.constant 0 : i32
    return %c0_i32, %c0_i32_0 : i32, i32
  }
  func.func @transform_5(%arg0: i32) -> (i32, i32) {
    %c0_i32 = arith.constant 0 : i32
    %c0_i32_0 = arith.constant 0 : i32
    %c0_i32_1 = arith.constant 0 : i32
    return %c0_i32, %c0_i32_0 : i32, i32
  }
  func.func @transform_6(%arg0: i32) -> (i32, i32) {
    %c0_i32 = arith.constant 0 : i32
    %c0_i32_0 = arith.constant 0 : i32
    %c0_i32_1 = arith.constant 0 : i32
    return %c0_i32, %c0_i32_0 : i32, i32
  }
  func.func @transform_7(%arg0: i32) -> (i32, i32) {
    %c0_i32 = arith.constant 0 : i32
    %c0_i32_0 = arith.constant 0 : i32
    %c0_i32_1 = arith.constant 0 : i32
    return %c0_i32, %c0_i32_0 : i32, i32
  }
  func.func @transform_8(%arg0: i32) -> (i32, i32) {
    %c0_i32 = arith.constant 0 : i32
    %c0_i32_0 = arith.constant 0 : i32
    return %arg0, %c0_i32 : i32, i32
  }
  func.func @transform_9(%arg0: i32) -> (i32, i32) {
    %c0_i32 = arith.constant 0 : i32
    %c0_i32_0 = arith.constant 0 : i32
    %c0_i32_1 = arith.constant 0 : i32
    return %c0_i32, %c0_i32_0 : i32, i32
  }
  func.func @transform_10(%arg0: i32) -> (i32, i32) {
    %c0_i32 = arith.constant 0 : i32
    %c0_i32_0 = arith.constant 0 : i32
    %c0_i32_1 = arith.constant 0 : i32
    return %c0_i32, %c0_i32_0 : i32, i32
  }
}

module attributes {stable_mosaic.version = 11 : i64} {
  func.func @_mlp_kernel(%arg0: i32, %arg1: i32, %arg2: memref<32x32xf32, #tpu.memory_space<vmem>>, %arg3: memref<32x32xf32, #tpu.memory_space<vmem>>, %arg4: memref<1x32xf32, #tpu.memory_space<vmem>>, %arg5: memref<1x32xf32, #tpu.memory_space<vmem>>, %arg6: memref<32x128xf32, #tpu.memory_space<vmem>>, %arg7: memref<1x128xf32, #tpu.memory_space<vmem>>, %arg8: memref<128x32xf32, #tpu.memory_space<vmem>>, %arg9: memref<1x32xf32, #tpu.memory_space<vmem>>, %arg10: memref<32x32xf32, #tpu.memory_space<vmem>>, %arg11: memref<32x32xf32, #tpu.memory_space<vmem>>, %arg12: memref<32x32xf32, #tpu.memory_space<vmem>>) attributes {dimension_semantics = [#tpu.dimension_semantics<parallel>, #tpu.dimension_semantics<arbitrary>], iteration_bounds = array<i64: 2, 1>, scalar_prefetch = 0 : i64, scratch_operands = 2 : i64, tpu.core_type = #tpu.core_type<tc>, window_params = [{transform_indices = @transform_0, window_bounds = array<i64: 32, 32>}, {transform_indices = @transform_1, window_bounds = array<i64: 32, 32>}, {pipeline_mode = #tpu.pipeline_mode<synchronous>, transform_indices = @transform_2, window_bounds = array<i64: 1, 32>}, {pipeline_mode = #tpu.pipeline_mode<synchronous>, transform_indices = @transform_3, window_bounds = array<i64: 1, 32>}, {transform_indices = @transform_4, window_bounds = array<i64: 32, 128>}, {transform_indices = @transform_5, window_bounds = array<i64: 1, 128>}, {transform_indices = @transform_6, window_bounds = array<i64: 128, 32>}, {pipeline_mode = #tpu.pipeline_mode<synchronous>, transform_indices = @transform_7, window_bounds = array<i64: 1, 32>}, {transform_indices = @transform_8, window_bounds = array<i64: 32, 32>}]} {
    %c0_i32 = arith.constant 0 : i32
    %0 = arith.cmpi eq, %arg1, %c0_i32 : i32
    %1 = arith.extui %0 : i1 to i32
    %c0_i32_0 = arith.constant 0 : i32
    %2 = arith.cmpi ne, %1, %c0_i32_0 : i32
    scf.if %2 {
      %c0_30 = arith.constant 0 : index
      %c0_31 = arith.constant 0 : index
      %57 = vector.load %arg2[%c0_30, %c0_31] : memref<32x32xf32, #tpu.memory_space<vmem>>, vector<32x32xf32>
      %c0_32 = arith.constant 0 : index
      %c0_33 = arith.constant 0 : index
      %58 = vector.load %arg3[%c0_32, %c0_33] : memref<32x32xf32, #tpu.memory_space<vmem>>, vector<32x32xf32>
      %59 = arith.addf %57, %58 : vector<32x32xf32>
      %c0_34 = arith.constant 0 : index
      %c0_35 = arith.constant 0 : index
      %60 = vector.load %arg4[%c0_34, %c0_35] : memref<1x32xf32, #tpu.memory_space<vmem>>, vector<1x32xf32>
      %c0_36 = arith.constant 0 : index
      %c0_37 = arith.constant 0 : index
      %61 = vector.load %arg5[%c0_36, %c0_37] : memref<1x32xf32, #tpu.memory_space<vmem>>, vector<1x32xf32>
      %cst_38 = arith.constant dense<0.000000e+00> : vector<32xf32>
      %62 = vector.multi_reduction <add>, %59, %cst_38 [1] : vector<32x32xf32> to vector<32xf32>
      %63 = vector.shape_cast %62 : vector<32xf32> to vector<32x1xf32>
      %cst_39 = arith.constant 3.200000e+01 : f32
      %64 = vector.broadcast %cst_39 : f32 to vector<32x1xf32>
      %65 = arith.divf %63, %64 : vector<32x1xf32>
      %66 = vector.broadcast %65 : vector<32x1xf32> to vector<32x32xf32>
      %67 = arith.subf %59, %66 : vector<32x32xf32>
      %68 = arith.mulf %67, %67 : vector<32x32xf32>
      %cst_40 = arith.constant dense<0.000000e+00> : vector<32xf32>
      %69 = vector.multi_reduction <add>, %68, %cst_40 [1] : vector<32x32xf32> to vector<32xf32>
      %70 = vector.shape_cast %69 : vector<32xf32> to vector<32x1xf32>
      %cst_41 = arith.constant 3.200000e+01 : f32
      %71 = vector.broadcast %cst_41 : f32 to vector<32x1xf32>
      %72 = arith.divf %70, %71 : vector<32x1xf32>
      %73 = vector.broadcast %65 : vector<32x1xf32> to vector<32x32xf32>
      %74 = arith.subf %59, %73 : vector<32x32xf32>
      %cst_42 = arith.constant 9.99999974E-6 : f32
      %75 = vector.broadcast %cst_42 : f32 to vector<32x1xf32>
      %76 = arith.addf %72, %75 : vector<32x1xf32>
      %77 = math.rsqrt %76 : vector<32x1xf32>
      %78 = vector.broadcast %77 : vector<32x1xf32> to vector<32x32xf32>
      %79 = arith.mulf %74, %78 : vector<32x32xf32>
      %80 = vector.broadcast %60 : vector<1x32xf32> to vector<32x32xf32>
      %81 = arith.mulf %79, %80 : vector<32x32xf32>
      %82 = vector.broadcast %61 : vector<1x32xf32> to vector<32x32xf32>
      %83 = arith.addf %81, %82 : vector<32x32xf32>
      %c0_43 = arith.constant 0 : index
      %c0_44 = arith.constant 0 : index
      %84 = vector.load %arg11[%c0_43, %c0_44] : memref<32x32xf32, #tpu.memory_space<vmem>>, vector<32x32xf32>
      tpu.vector_store %arg11[%c0_43, %c0_44], %83 {strides = array<i32>} : memref<32x32xf32, #tpu.memory_space<vmem>>, vector<32x32xf32>,
      %cst_45 = arith.constant 0.000000e+00 : f32
      %85 = vector.broadcast %cst_45 : f32 to vector<32x32xf32>
      %c0_46 = arith.constant 0 : index
      %c0_47 = arith.constant 0 : index
      %86 = vector.load %arg12[%c0_46, %c0_47] : memref<32x32xf32, #tpu.memory_space<vmem>>, vector<32x32xf32>
      tpu.vector_store %arg12[%c0_46, %c0_47], %85 {strides = array<i32>} : memref<32x32xf32, #tpu.memory_space<vmem>>, vector<32x32xf32>,
    } else {
    }
    %c0 = arith.constant 0 : index
    %c0_1 = arith.constant 0 : index
    %3 = vector.load %arg11[%c0, %c0_1] : memref<32x32xf32, #tpu.memory_space<vmem>>, vector<32x32xf32>
    %c0_2 = arith.constant 0 : index
    %c0_3 = arith.constant 0 : index
    %4 = vector.load %arg6[%c0_2, %c0_3] : memref<32x128xf32, #tpu.memory_space<vmem>>, vector<32x128xf32>
    %cst = arith.constant dense<0.000000e+00> : vector<32x128xf32>
    %5 = tpu.matmul %3, %4, %cst {dimension_numbers = #tpu.dot_dimension_numbers<[1], [0], [0], [1], [0, 0, 1, 1], [], []>} : vector<32x32xf32>, vector<32x128xf32>, vector<32x128xf32> -> vector<32x128xf32>
    %c0_4 = arith.constant 0 : index
    %c0_5 = arith.constant 0 : index
    %6 = vector.load %arg7[%c0_4, %c0_5] : memref<1x128xf32, #tpu.memory_space<vmem>>, vector<1x128xf32>
    %7 = vector.broadcast %6 : vector<1x128xf32> to vector<32x128xf32>
    %8 = arith.addf %5, %7 : vector<32x128xf32>
    %c0_6 = arith.constant 0 : index
    %c0_7 = arith.constant 0 : index
    %9 = vector.load %arg12[%c0_6, %c0_7] : memref<32x32xf32, #tpu.memory_space<vmem>>, vector<32x32xf32>
    %cst_8 = arith.constant 5.000000e-01 : f32
    %10 = vector.broadcast %cst_8 : f32 to vector<32x128xf32>
    %11 = arith.mulf %10, %8 : vector<32x128xf32>
    %cst_9 = arith.constant 0.707106769 : f32
    %12 = vector.broadcast %cst_9 : f32 to vector<32x128xf32>
    %13 = arith.mulf %8, %12 : vector<32x128xf32>
    %14 = math.absf %13 : vector<32x128xf32>
    %cst_10 = arith.constant 0.327591091 : f32
    %15 = vector.broadcast %cst_10 : f32 to vector<32x128xf32>
    %16 = arith.mulf %15, %14 : vector<32x128xf32>
    %cst_11 = arith.constant 1.000000e+00 : f32
    %17 = vector.broadcast %cst_11 : f32 to vector<32x128xf32>
    %18 = arith.addf %17, %16 : vector<32x128xf32>
    %cst_12 = arith.constant 1.000000e+00 : f32
    %19 = vector.broadcast %cst_12 : f32 to vector<32x128xf32>
    %20 = arith.divf %19, %18 : vector<32x128xf32>
    %cst_13 = arith.constant 1.06140542 : f32
    %21 = vector.broadcast %cst_13 : f32 to vector<32x128xf32>
    %22 = arith.mulf %21, %20 : vector<32x128xf32>
    %cst_14 = arith.constant -1.45315206 : f32
    %23 = vector.broadcast %cst_14 : f32 to vector<32x128xf32>
    %24 = arith.addf %22, %23 : vector<32x128xf32>
    %25 = arith.mulf %24, %20 : vector<32x128xf32>
    %cst_15 = arith.constant 1.42141378 : f32
    %26 = vector.broadcast %cst_15 : f32 to vector<32x128xf32>
    %27 = arith.addf %25, %26 : vector<32x128xf32>
    %28 = arith.mulf %27, %20 : vector<32x128xf32>
    %cst_16 = arith.constant -0.284496725 : f32
    %29 = vector.broadcast %cst_16 : f32 to vector<32x128xf32>
    %30 = arith.addf %28, %29 : vector<32x128xf32>
    %31 = arith.mulf %30, %20 : vector<32x128xf32>
    %cst_17 = arith.constant 0.254829586 : f32
    %32 = vector.broadcast %cst_17 : f32 to vector<32x128xf32>
    %33 = arith.addf %31, %32 : vector<32x128xf32>
    %34 = arith.mulf %33, %20 : vector<32x128xf32>
    %cst_18 = arith.constant 0.000000e+00 : f32
    %35 = vector.broadcast %cst_18 : f32 to vector<32x128xf32>
    %36 = arith.subf %35, %14 : vector<32x128xf32>
    %37 = arith.mulf %36, %14 : vector<32x128xf32>
    %38 = math.exp %37 : vector<32x128xf32>
    %39 = arith.mulf %34, %38 : vector<32x128xf32>
    %cst_19 = arith.constant 1.000000e+00 : f32
    %40 = vector.broadcast %cst_19 : f32 to vector<32x128xf32>
    %41 = arith.subf %40, %39 : vector<32x128xf32>
    %cst_20 = arith.constant 0.000000e+00 : f32
    %42 = vector.broadcast %cst_20 : f32 to vector<32x128xf32>
    %43 = arith.cmpf oge, %13, %42 : vector<32x128xf32>
    %cst_21 = arith.constant 0.000000e+00 : f32
    %44 = vector.broadcast %cst_21 : f32 to vector<32x128xf32>
    %45 = arith.subf %44, %41 : vector<32x128xf32>
    %46 = arith.select %43, %41, %45 : vector<32x128xi1>, vector<32x128xf32>
    %cst_22 = arith.constant 1.000000e+00 : f32
    %47 = vector.broadcast %cst_22 : f32 to vector<32x128xf32>
    %48 = arith.addf %47, %46 : vector<32x128xf32>
    %49 = arith.mulf %11, %48 : vector<32x128xf32>
    %c0_23 = arith.constant 0 : index
    %c0_24 = arith.constant 0 : index
    %50 = vector.load %arg8[%c0_23, %c0_24] : memref<128x32xf32, #tpu.memory_space<vmem>>, vector<128x32xf32>
    %cst_25 = arith.constant dense<0.000000e+00> : vector<32x32xf32>
    %51 = tpu.matmul %49, %50, %cst_25 {dimension_numbers = #tpu.dot_dimension_numbers<[1], [0], [0], [1], [0, 0, 1, 1], [], []>} : vector<32x128xf32>, vector<128x32xf32>, vector<32x32xf32> -> vector<32x32xf32>
    %52 = arith.addf %9, %51 : vector<32x32xf32>
    %c0_26 = arith.constant 0 : index
    %c0_27 = arith.constant 0 : index
    %53 = vector.load %arg12[%c0_26, %c0_27] : memref<32x32xf32, #tpu.memory_space<vmem>>, vector<32x32xf32>
    tpu.vector_store %arg12[%c0_26, %c0_27], %52 {strides = array<i32>} : memref<32x32xf32, #tpu.memory_space<vmem>>, vector<32x32xf32>,
    %c0_i32_28 = arith.constant 0 : i32
    %54 = arith.cmpi eq, %arg1, %c0_i32_28 : i32
    %55 = arith.extui %54 : i1 to i32
    %c0_i32_29 = arith.constant 0 : i32
    %56 = arith.cmpi ne, %55, %c0_i32_29 : i32
    scf.if %56 {
      %c0_30 = arith.constant 0 : index
      %c0_31 = arith.constant 0 : index
      %57 = vector.load %arg2[%c0_30, %c0_31] : memref<32x32xf32, #tpu.memory_space<vmem>>, vector<32x32xf32>
      %c0_32 = arith.constant 0 : index
      %c0_33 = arith.constant 0 : index
      %58 = vector.load %arg3[%c0_32, %c0_33] : memref<32x32xf32, #tpu.memory_space<vmem>>, vector<32x32xf32>
      %59 = arith.addf %57, %58 : vector<32x32xf32>
      %c0_34 = arith.constant 0 : index
      %c0_35 = arith.constant 0 : index
      %60 = vector.load %arg12[%c0_34, %c0_35] : memref<32x32xf32, #tpu.memory_space<vmem>>, vector<32x32xf32>
      %61 = arith.addf %59, %60 : vector<32x32xf32>
      %c0_36 = arith.constant 0 : index
      %c0_37 = arith.constant 0 : index
      %62 = vector.load %arg9[%c0_36, %c0_37] : memref<1x32xf32, #tpu.memory_space<vmem>>, vector<1x32xf32>
      %63 = vector.broadcast %62 : vector<1x32xf32> to vector<32x32xf32>
      %64 = arith.addf %61, %63 : vector<32x32xf32>
      %c0_38 = arith.constant 0 : index
      %c0_39 = arith.constant 0 : index
      %65 = vector.load %arg10[%c0_38, %c0_39] : memref<32x32xf32, #tpu.memory_space<vmem>>, vector<32x32xf32>
      tpu.vector_store %arg10[%c0_38, %c0_39], %64 {strides = array<i32>} : memref<32x32xf32, #tpu.memory_space<vmem>>, vector<32x32xf32>,
    } else {
    }
    return
  }
  func.func @transform_0(%arg0: i32, %arg1: i32) -> (i32, i32) {
    %c0_i32 = arith.constant 0 : i32
    %c0_i32_0 = arith.constant 0 : i32
    return %arg0, %c0_i32 : i32, i32
  }
  func.func @transform_1(%arg0: i32, %arg1: i32) -> (i32, i32) {
    %c0_i32 = arith.constant 0 : i32
    %c0_i32_0 = arith.constant 0 : i32
    return %arg0, %c0_i32 : i32, i32
  }
  func.func @transform_2(%arg0: i32, %arg1: i32) -> (i32, i32) {
    %c0_i32 = arith.constant 0 : i32
    %c0_i32_0 = arith.constant 0 : i32
    %c0_i32_1 = arith.constant 0 : i32
    return %c0_i32, %c0_i32_0 : i32, i32
  }
  func.func @transform_3(%arg0: i32, %arg1: i32) -> (i32, i32) {
    %c0_i32 = arith.constant 0 : i32
    %c0_i32_0 = arith.constant 0 : i32
    %c0_i32_1 = arith.constant 0 : i32
    return %c0_i32, %c0_i32_0 : i32, i32
  }
  func.func @transform_4(%arg0: i32, %arg1: i32) -> (i32, i32) {
    %c0_i32 = arith.constant 0 : i32
    %c0_i32_0 = arith.constant 0 : i32
    return %c0_i32, %arg1 : i32, i32
  }
  func.func @transform_5(%arg0: i32, %arg1: i32) -> (i32, i32) {
    %c0_i32 = arith.constant 0 : i32
    %c0_i32_0 = arith.constant 0 : i32
    return %c0_i32, %arg1 : i32, i32
  }
  func.func @transform_6(%arg0: i32, %arg1: i32) -> (i32, i32) {
    %c0_i32 = arith.constant 0 : i32
    %c0_i32_0 = arith.constant 0 : i32
    return %arg1, %c0_i32 : i32, i32
  }
  func.func @transform_7(%arg0: i32, %arg1: i32) -> (i32, i32) {
    %c0_i32 = arith.constant 0 : i32
    %c0_i32_0 = arith.constant 0 : i32
    %c0_i32_1 = arith.constant 0 : i32
    return %c0_i32, %c0_i32_0 : i32, i32
  }
  func.func @transform_8(%arg0: i32, %arg1: i32) -> (i32, i32) {
    %c0_i32 = arith.constant 0 : i32
    %c0_i32_0 = arith.constant 0 : i32
    return %arg0, %c0_i32 : i32, i32
  }
}

</mosaic_0001>

<llo_original>
// kernel: recurrent_residual_block.3
$region0: #{recurrent_residual_block.3}
  #allocation0 [shape = 'u32[]', space=smem, size = 0x4, offset = 0x4, fixed_abs, tag = 'smem constant byte address 0x4 - core index']
  #allocation1 [shape = 'u32[144,128]{1,0:T(1,128)}', space=vmem, size = 0x12000, scoped, tag = 'internal scratch']
  #allocation2 [shape = 'f32[32,32]{1,0:T(8,128)}', space=vmem, size = 0x4000, scoped, tag = 'scratch operand']
  #allocation3 [shape = 'f32[32,32]{1,0:T(8,128)}', space=vmem, size = 0x4000, scoped, tag = 'scratch operand']
  %s0 = inlined_call_operand.vmem [shape: f32[64,32], index: 0, kind: input, shape index: {}]
  %s1 = inlined_call_operand.vmem [shape: f32[64,32], index: 1, kind: input, shape index: {}]
  %s2 = inlined_call_operand.vmem [shape: f32[1,32], index: 2, kind: input, shape index: {}]
  %s3 = inlined_call_operand.vmem [shape: f32[1,32], index: 3, kind: input, shape index: {}]
  %s4 = inlined_call_operand.vmem [shape: f32[32,128], index: 4, kind: input, shape index: {}]
  %s5 = inlined_call_operand.vmem [shape: f32[1,128], index: 5, kind: input, shape index: {}]
  %s6 = inlined_call_operand.vmem [shape: f32[128,32], index: 6, kind: input, shape index: {}]
  %s7 = inlined_call_operand.vmem [shape: f32[1,32], index: 7, kind: input, shape index: {}]
  %s8 = inlined_call_operand.vmem [shape: f32[64,32], index: 8, kind: output, shape index: {}]
  %s9 = sld [smem:[#allocation0]]
  $region73: #{recurrent_residual_block.3} parent=0
    _
  %s11 = ssub.s32 1, %s9
  %s12 = scalar_select 0, %s11, %s9
  loop: start=0, step=1, limit=4
  $region2: #{recurrent_residual_block.3} parent=0 // loop_pre_header
    _
  $region3: #{recurrent_residual_block.3} parent=0 // loop_header
    %s14 = sphi 0, %s18
    %p15 = scmp.ge.s32.totalorder %s14, 4
    %s21 = sphi 0, %s33
    %s22 = sphi 0, %s29
    %s23 = sphi 0, %s21
    %s24 = sphi 0, %s22
    %s25 = sphi 0, %s23
    %s26 = sphi 0, %s24
    %s36 = sphi 0, %s38
    %s39 = sphi 0, %s36
    %s40 = sphi 0, %s39
    %s56 = sphi 0, %s40
    %s62 = sphi 0, %s64
    %s65 = sphi 0, %s62
    %s66 = sphi 0, %s65
    %s82 = sphi 0, %s66
    %s86 = sphi 0, %s86
    %s88 = sphi 0, %s86
    %s89 = sphi 0, %s88
    %s103 = sphi 0, %s89
    %s107 = sphi 0, %s107
    %s109 = sphi 0, %s107
    %s110 = sphi 0, %s109
    %s124 = sphi 0, %s110
    %s130 = sphi 0, %s132
    %s133 = sphi 0, %s130
    %s134 = sphi 0, %s133
    %s150 = sphi 0, %s134
    %s156 = sphi 0, %s158
    %s159 = sphi 0, %s156
    %s160 = sphi 0, %s159
    %s176 = sphi 0, %s160
    %s182 = sphi 0, %s184
    %s185 = sphi 0, %s182
    %s186 = sphi 0, %s185
    %s202 = sphi 0, %s186
    %s206 = sphi 0, %s206
    %s208 = sphi 0, %s206
    %s209 = sphi 0, %s208
    %s223 = sphi 0, %s209
    %s229 = sphi 0, %s231
    %s232 = sphi 0, %s229
    %s233 = sphi 0, %s232
    %s249 = sphi 0, %s233
  $region4: #{recurrent_residual_block.3} parent=0 // loop_header_branch
    %17 = sbr.rel (%p15) target = $region8
  $region5: #{recurrent_residual_block.3} parent=0 // loop_body
    %s19 = ssub.s32 %s14, 1
    %s20 = ssub.s32 %s14, 2
    %s27 = sadd.s32 1, %s22
    %p28 = scmp.ge.s32.totalorder %s27, 1
    %s29 = scalar_select %p28, 0, %s27
    %s30 = sadd.s32 1, %s21
    %s31 = scalar_select %p28, %s30, %s21
    %p32 = scmp.ge.s32.totalorder %s31, 2
    %s33 = scalar_select %p32, 0, %s31
    %s34 = ssub.s32 %s21, %s33
    %p35 = scmp.eq.s32.totalorder %s34, 0
    %s37 = sadd.s32 %s36, 1
    %s38 = scalar_select %p35, %s36, %s37
    %p41 = pneg %p35
    %p42 = scmp.eq.s32.totalorder %s14, 1
    %p43 = por %p41, %p42
    %p44 = scmp.ne.s32.totalorder %s36, %s39
    %p45 = scmp.eq.s32.totalorder %s14, 0
    %p46 = por %p44, %p45
    %p47 = scmp.ne.s32.totalorder %s36, %s39
    %p48 = scmp.eq.s32.totalorder %s19, 1
    %p49 = por %p47, %p48
    %p50 = scmp.ne.s32.totalorder %s39, %s40
    %p51 = scmp.eq.s32.totalorder %s19, 0
    %p52 = por %p50, %p51
    %p53 = scmp.ne.s32.totalorder %s39, %s40
    %p54 = scmp.eq.s32.totalorder %s20, 1
    %p55 = por %p53, %p54
    %p57 = scmp.ne.s32.totalorder %s40, %s56
    %p58 = scmp.eq.s32.totalorder %s20, 0
    %p59 = por %p57, %p58
    %s60 = ssub.s32 %s21, %s33
    %p61 = scmp.eq.s32.totalorder %s60, 0
    %s63 = sadd.s32 %s62, 1
    %s64 = scalar_select %p61, %s62, %s63
    %p67 = pneg %p61
    %p68 = scmp.eq.s32.totalorder %s14, 1
    %p69 = por %p67, %p68
    %p70 = scmp.ne.s32.totalorder %s62, %s65
    %p71 = scmp.eq.s32.totalorder %s14, 0
    %p72 = por %p70, %p71
    %p73 = scmp.ne.s32.totalorder %s62, %s65
    %p74 = scmp.eq.s32.totalorder %s19, 1
    %p75 = por %p73, %p74
    %p76 = scmp.ne.s32.totalorder %s65, %s66
    %p77 = scmp.eq.s32.totalorder %s19, 0
    %p78 = por %p76, %p77
    %p79 = scmp.ne.s32.totalorder %s65, %s66
    %p80 = scmp.eq.s32.totalorder %s20, 1
    %p81 = por %p79, %p80
    %p83 = scmp.ne.s32.totalorder %s66, %s82
    %p84 = scmp.eq.s32.totalorder %s20, 0
    %p85 = por %p83, %p84
    %s87 = sadd.s32 %s86, 1
    %p90 = scmp.eq.s32.totalorder %s14, 1
    %p91 = scmp.ne.s32.totalorder %s86, %s88
    %p92 = scmp.eq.s32.totalorder %s14, 0
    %p93 = por %p91, %p92
    %p94 = scmp.ne.s32.totalorder %s86, %s88
    %p95 = scmp.eq.s32.totalorder %s19, 1
    %p96 = por %p94, %p95
    %p97 = scmp.ne.s32.totalorder %s88, %s89
    %p98 = scmp.eq.s32.totalorder %s19, 0
    %p99 = por %p97, %p98
    %p100 = scmp.ne.s32.totalorder %s88, %s89
    %p101 = scmp.eq.s32.totalorder %s20, 1
    %p102 = por %p100, %p101
    %p104 = scmp.ne.s32.totalorder %s89, %s103
    %p105 = scmp.eq.s32.totalorder %s20, 0
    %p106 = por %p104, %p105
    %s108 = sadd.s32 %s107, 1
    %p111 = scmp.eq.s32.totalorder %s14, 1
    %p112 = scmp.ne.s32.totalorder %s107, %s109
    %p113 = scmp.eq.s32.totalorder %s14, 0
    %p114 = por %p112, %p113
    %p115 = scmp.ne.s32.totalorder %s107, %s109
    %p116 = scmp.eq.s32.totalorder %s19, 1
    %p117 = por %p115, %p116
    %p118 = scmp.ne.s32.totalorder %s109, %s110
    %p119 = scmp.eq.s32.totalorder %s19, 0
    %p120 = por %p118, %p119
    %p121 = scmp.ne.s32.totalorder %s109, %s110
    %p122 = scmp.eq.s32.totalorder %s20, 1
    %p123 = por %p121, %p122
    %p125 = scmp.ne.s32.totalorder %s110, %s124
    %p126 = scmp.eq.s32.totalorder %s20, 0
    %p127 = por %p125, %p126
    %s128 = ssub.s32 %s22, %s29
    %p129 = scmp.eq.s32.totalorder %s128, 0
    %s131 = sadd.s32 %s130, 1
    %s132 = scalar_select %p129, %s130, %s131
    %p135 = pneg %p129
    %p136 = scmp.eq.s32.totalorder %s14, 1
    %p137 = por %p135, %p136
    %p138 = scmp.ne.s32.totalorder %s130, %s133
    %p139 = scmp.eq.s32.totalorder %s14, 0
    %p140 = por %p138, %p139
    %p141 = scmp.ne.s32.totalorder %s130, %s133
    %p142 = scmp.eq.s32.totalorder %s19, 1
    %p143 = por %p141, %p142
    %p144 = scmp.ne.s32.totalorder %s133, %s134
    %p145 = scmp.eq.s32.totalorder %s19, 0
    %p146 = por %p144, %p145
    %p147 = scmp.ne.s32.totalorder %s133, %s134
    %p148 = scmp.eq.s32.totalorder %s20, 1
    %p149 = por %p147, %p148
    %p151 = scmp.ne.s32.totalorder %s134, %s150
    %p152 = scmp.eq.s32.totalorder %s20, 0
    %p153 = por %p151, %p152
    %s154 = ssub.s32 %s22, %s29
    %p155 = scmp.eq.s32.totalorder %s154, 0
    %s157 = sadd.s32 %s156, 1
    %s158 = scalar_select %p155, %s156, %s157
    %p161 = pneg %p155
    %p162 = scmp.eq.s32.totalorder %s14, 1
    %p163 = por %p161, %p162
    %p164 = scmp.ne.s32.totalorder %s156, %s159
    %p165 = scmp.eq.s32.totalorder %s14, 0
    %p166 = por %p164, %p165
    %p167 = scmp.ne.s32.totalorder %s156, %s159
    %p168 = scmp.eq.s32.totalorder %s19, 1
    %p169 = por %p167, %p168
    %p170 = scmp.ne.s32.totalorder %s159, %s160
    %p171 = scmp.eq.s32.totalorder %s19, 0
    %p172 = por %p170, %p171
    %p173 = scmp.ne.s32.totalorder %s159, %s160
    %p174 = scmp.eq.s32.totalorder %s20, 1
    %p175 = por %p173, %p174
    %p177 = scmp.ne.s32.totalorder %s160, %s176
    %p178 = scmp.eq.s32.totalorder %s20, 0
    %p179 = por %p177, %p178
    %s180 = ssub.s32 %s22, %s29
    %p181 = scmp.eq.s32.totalorder %s180, 0
    %s183 = sadd.s32 %s182, 1
    %s184 = scalar_select %p181, %s182, %s183
    %p187 = pneg %p181
    %p188 = scmp.eq.s32.totalorder %s14, 1
    %p189 = por %p187, %p188
    %p190 = scmp.ne.s32.totalorder %s182, %s185
    %p191 = scmp.eq.s32.totalorder %s14, 0
    %p192 = por %p190, %p191
    %p193 = scmp.ne.s32.totalorder %s182, %s185
    %p194 = scmp.eq.s32.totalorder %s19, 1
    %p195 = por %p193, %p194
    %p196 = scmp.ne.s32.totalorder %s185, %s186
    %p197 = scmp.eq.s32.totalorder %s19, 0
    %p198 = por %p196, %p197
    %p199 = scmp.ne.s32.totalorder %s185, %s186
    %p200 = scmp.eq.s32.totalorder %s20, 1
    %p201 = por %p199, %p200
    %p203 = scmp.ne.s32.totalorder %s186, %s202
    %p204 = scmp.eq.s32.totalorder %s20, 0
    %p205 = por %p203, %p204
    %s207 = sadd.s32 %s206, 1
    %p210 = scmp.eq.s32.totalorder %s14, 1
    %p211 = scmp.ne.s32.totalorder %s206, %s208
    %p212 = scmp.eq.s32.totalorder %s14, 0
    %p213 = por %p211, %p212
    %p214 = scmp.ne.s32.totalorder %s206, %s208
    %p215 = scmp.eq.s32.totalorder %s19, 1
    %p216 = por %p214, %p215
    %p217 = scmp.ne.s32.totalorder %s208, %s209
    %p218 = scmp.eq.s32.totalorder %s19, 0
    %p219 = por %p217, %p218
    %p220 = scmp.ne.s32.totalorder %s208, %s209
    %p221 = scmp.eq.s32.totalorder %s20, 1
    %p222 = por %p220, %p221
    %p224 = scmp.ne.s32.totalorder %s209, %s223
    %p225 = scmp.eq.s32.totalorder %s20, 0
    %p226 = por %p224, %p225
    %s227 = ssub.s32 %s21, %s33
    %p228 = scmp.eq.s32.totalorder %s227, 0
    %s230 = sadd.s32 %s229, 1
    %s231 = scalar_select %p228, %s229, %s230
    %p234 = pneg %p228
    %p235 = scmp.eq.s32.totalorder %s14, 1
    %p236 = por %p234, %p235
    %p237 = scmp.ne.s32.totalorder %s229, %s232
    %p238 = scmp.eq.s32.totalorder %s14, 0
    %p239 = por %p237, %p238
    %p240 = scmp.ne.s32.totalorder %s229, %s232
    %p241 = scmp.eq.s32.totalorder %s19, 1
    %p242 = por %p240, %p241
    %p243 = scmp.ne.s32.totalorder %s232, %s233
    %p244 = scmp.eq.s32.totalorder %s19, 0
    %p245 = por %p243, %p244
    %p246 = scmp.ne.s32.totalorder %s232, %s233
    %p247 = scmp.eq.s32.totalorder %s20, 1
    %p248 = por %p246, %p247
    %p250 = scmp.ne.s32.totalorder %s233, %s249
    %p251 = scmp.eq.s32.totalorder %s20, 0
    %p252 = por %p250, %p251
    %p253 = scmp.le.s32.totalorder 1, %s14
    %p254 = scmp.lt.s32.totalorder %s14, 3
    %p255 = pnand %p253, %p254
    %p256 = pneg %p255
    // Predicated region
    $region9: #{recurrent_residual_block.3} parent=5 // pred_check
      _
    $region10: #{recurrent_residual_block.3} parent=5 // pred_check_branch
      %258 = sbr.rel (%p255) target = $region12
    $region11: #{recurrent_residual_block.3} parent=5 // pred_region
      %s259 = ssub.s32 %s14, 1
      // Predicated region
      $region13: #{recurrent_residual_block.3} parent=11 // pred_check
        %p260 = pneg %p99
      $region14: #{recurrent_residual_block.3} parent=11 // pred_check_branch
        %262 = sbr.rel (%p260) target = $region16
      $region15: #{recurrent_residual_block.3} parent=11 // pred_region
        _
      $region16: #{recurrent_residual_block.3} parent=11 // pred_fallthru
        _
      // Predicated region
      $region17: #{recurrent_residual_block.3} parent=11 // pred_check
        %p263 = pneg %p120
      $region18: #{recurrent_residual_block.3} parent=11 // pred_check_branch
        %265 = sbr.rel (%p263) target = $region20
      $region19: #{recurrent_residual_block.3} parent=11 // pred_region
        _
      $region20: #{recurrent_residual_block.3} parent=11 // pred_fallthru
        _
      // Predicated region
      $region21: #{recurrent_residual_block.3} parent=11 // pred_check
        %p266 = pneg %p146
      $region22: #{recurrent_residual_block.3} parent=11 // pred_check_branch
        %268 = sbr.rel (%p266) target = $region24
      $region23: #{recurrent_residual_block.3} parent=11 // pred_region
        %p269 = scmp.lt.s32.totalorder %s24, 0
        %s270 = scalar_select %p269, %s24, 0
        %s271 = smul.addr %s270, 8
        %s272 = scalar_lea.vmem %s4, %s271
      $region24: #{recurrent_residual_block.3} parent=11 // pred_fallthru
        _
      // Predicated region
      $region25: #{recurrent_residual_block.3} parent=11 // pred_check
        %p273 = pneg %p172
      $region26: #{recurrent_residual_block.3} parent=11 // pred_check_branch
        %275 = sbr.rel (%p273) target = $region28
      $region27: #{recurrent_residual_block.3} parent=11 // pred_region
        %p276 = scmp.lt.s32.totalorder %s24, 0
        %s277 = scalar_select %p276, %s24, 0
        %s278 = scalar_lea.vmem %s5, %s277
      $region28: #{recurrent_residual_block.3} parent=11 // pred_fallthru
        _
      // Predicated region
      $region29: #{recurrent_residual_block.3} parent=11 // pred_check
        %p279 = pneg %p198
      $region30: #{recurrent_residual_block.3} parent=11 // pred_check_branch
        %281 = sbr.rel (%p279) target = $region32
      $region31: #{recurrent_residual_block.3} parent=11 // pred_region
        %s282 = smul.u32 16, %s24
        %p283 = scmp.lt.s32.totalorder %s282, 15
        %s284 = scalar_select %p283, %s282, 15
        %s285 = smul.addr %s284, 8
        %s286 = scalar_lea.vmem %s6, %s285
        %s287 = smul.u32 16, %s24
      $region32: #{recurrent_residual_block.3} parent=11 // pred_fallthru
        _
      // Predicated region
      $region33: #{recurrent_residual_block.3} parent=11 // pred_check
        %p288 = pneg %p219
      $region34: #{recurrent_residual_block.3} parent=11 // pred_check_branch
        %290 = sbr.rel (%p288) target = $region36
      $region35: #{recurrent_residual_block.3} parent=11 // pred_region
        _
      $region36: #{recurrent_residual_block.3} parent=11 // pred_fallthru
        _
    $region12: #{recurrent_residual_block.3} parent=5 // pred_fallthru
      _
    %p291 = scmp.lt.s32.totalorder %s14, 2
    // Predicated region
    $region37: #{recurrent_residual_block.3} parent=5 // pred_check
      %p292 = pneg %p291
    $region38: #{recurrent_residual_block.3} parent=5 // pred_check_branch
      %294 = sbr.rel (%p292) target = $region40
    $region39: #{recurrent_residual_block.3} parent=5 // pred_region
      // Predicated region
      $region41: #{recurrent_residual_block.3} parent=39 // pred_check
        %p295 = pneg %p46
      $region42: #{recurrent_residual_block.3} parent=39 // pred_check_branch
        %297 = sbr.rel (%p295) target = $region44
      $region43: #{recurrent_residual_block.3} parent=39 // pred_region
        %s298 = smul.u32 4, %s21
        %p299 = scmp.lt.s32.totalorder %s298, 7
        %s300 = scalar_select %p299, %s298, 7
        %s301 = smul.addr %s300, 8
        %s302 = scalar_lea.vmem %s0, %s301
        %s303 = smul.u32 4, %s21
      $region44: #{recurrent_residual_block.3} parent=39 // pred_fallthru
        _
      // Predicated region
      $region45: #{recurrent_residual_block.3} parent=39 // pred_check
        %p304 = pneg %p72
      $region46: #{recurrent_residual_block.3} parent=39 // pred_check_branch
        %306 = sbr.rel (%p304) target = $region48
      $region47: #{recurrent_residual_block.3} parent=39 // pred_region
        %s307 = smul.u32 4, %s21
        %p308 = scmp.lt.s32.totalorder %s307, 7
        %s309 = scalar_select %p308, %s307, 7
        %s310 = smul.addr %s309, 8
        %s311 = scalar_lea.vmem %s1, %s310
        %s312 = smul.u32 4, %s21
      $region48: #{recurrent_residual_block.3} parent=39 // pred_fallthru
        _
    $region40: #{recurrent_residual_block.3} parent=5 // pred_fallthru
      _
    %p313 = scmp.le.s32.totalorder 1, %s14
    %p314 = scmp.lt.s32.totalorder %s14, 3
    %p315 = pnand %p313, %p314
    %p316 = pneg %p315
    // Predicated region
    $region49: #{recurrent_residual_block.3} parent=5 // pred_check
      _
    $region50: #{recurrent_residual_block.3} parent=5 // pred_check_branch
      %318 = sbr.rel (%p315) target = $region52
    $region51: #{recurrent_residual_block.3} parent=5 // pred_region
      %s319 = ssub.s32 %s14, 1
      %s320 = smul.u32 4, %s23
      %p321 = scmp.lt.s32.totalorder %s320, 7
      %s322 = scalar_select %p321, %s320, 7
      %s323 = smul.addr %s322, 8
      %s324 = scalar_lea.vmem %s0, %s323
      %p325 = pneg %p52
      %p326 = pneg %p49
      %s327 = smul.u32 4, %s23
      %p328 = scmp.lt.s32.totalorder %s327, 7
      %s329 = scalar_select %p328, %s327, 7
      %s330 = smul.addr %s329, 8
      %s331 = scalar_lea.vmem %s1, %s330
      %p332 = pneg %p78
      %p333 = pneg %p75
      %p334 = pneg %p99
      %p335 = pneg %p96
      %p336 = pneg %p120
      %p337 = pneg %p117
      %p338 = scmp.lt.s32.totalorder %s24, 0
      %s339 = scalar_select %p338, %s24, 0
      %s340 = smul.addr %s339, 8
      %s341 = scalar_lea.vmem %s4, %s340
      %p342 = pneg %p146
      %p343 = pneg %p143
      %p344 = scmp.lt.s32.totalorder %s24, 0
      %s345 = scalar_select %p344, %s24, 0
      %s346 = scalar_lea.vmem %s5, %s345
      %p347 = pneg %p172
      %p348 = pneg %p169
      %s349 = smul.u32 16, %s24
      %p350 = scmp.lt.s32.totalorder %s349, 15
      %s351 = scalar_select %p350, %s349, 15
      %s352 = smul.addr %s351, 8
      %s353 = scalar_lea.vmem %s6, %s352
      %p354 = pneg %p198
      %p355 = pneg %p195
      %p356 = pneg %p219
      %p357 = pneg %p216
      %p358 = pneg %p245
      %p359 = pneg %p242
      %s360 = smul.u32 4, %s23
      %p361 = scmp.lt.s32.totalorder %s360, 7
      %s362 = scalar_select %p361, %s360, 7
      %s363 = smul.addr %s362, 8
      %s364 = scalar_lea.vmem %s8, %s363
      %s365 = smul.u32 4, %s23
      %p366 = scmp.lt.s32.totalorder %s365, 7
      %s367 = scalar_select %p366, %s365, 7
      %s368 = smul.addr %s367, 8
      %s369 = scalar_lea.vmem %s0, %s368
      %s370 = smul.u32 4, %s23
      %s371 = smul.u32 4, %s23
      %p372 = scmp.lt.s32.totalorder %s371, 7
      %s373 = scalar_select %p372, %s371, 7
      %s374 = smul.addr %s373, 8
      %s375 = scalar_lea.vmem %s1, %s374
      %s376 = smul.u32 4, %s23
      %p377 = scmp.lt.s32.totalorder %s24, 0
      %s378 = scalar_select %p377, %s24, 0
      %s379 = smul.addr %s378, 8
      %s380 = scalar_lea.vmem %s4, %s379
      %p381 = scmp.lt.s32.totalorder %s24, 0
      %s382 = scalar_select %p381, %s24, 0
      %s383 = scalar_lea.vmem %s5, %s382
      %s384 = smul.u32 16, %s24
      %p385 = scmp.lt.s32.totalorder %s384, 15
      %s386 = scalar_select %p385, %s384, 15
      %s387 = smul.addr %s386, 8
      %s388 = scalar_lea.vmem %s6, %s387
      %s389 = smul.u32 16, %s24
      %s390 = smul.u32 4, %s23
      %p391 = scmp.lt.s32.totalorder %s390, 7
      %s392 = scalar_select %p391, %s390, 7
      %s393 = smul.addr %s392, 8
      %s394 = scalar_lea.vmem %s8, %s393
      %s395 = smul.u32 4, %s23
      %p396 = scmp.eq.s32.totalorder %s24, 0
      // Predicated region
      $region53: #{recurrent_residual_block.3} parent=51 // pred_check
        %p397 = pneg %p396
      $region54: #{recurrent_residual_block.3} parent=51 // pred_check_branch
        %399 = sbr.rel (%p397) target = $region56
      $region55: #{recurrent_residual_block.3} parent=51 // pred_region
        %v400 = vld [vmem:[%s369] sm:$0xff]
        %v401 = vld [vmem:[%s369 + $0x8] sm:$0xff]
        %v402 = vld [vmem:[%s369 + $0x10] sm:$0xff]
        %v403 = vld [vmem:[%s369 + $0x18] sm:$0xff]
        %v404 = vld [vmem:[%s375] sm:$0xff]
        %v405 = vld [vmem:[%s375 + $0x8] sm:$0xff]
        %v406 = vld [vmem:[%s375 + $0x10] sm:$0xff]
        %v407 = vld [vmem:[%s375 + $0x18] sm:$0xff]
        %v408 = vadd.f32 %v400, %v404
        %v409 = vadd.f32 %v401, %v405
        %v410 = vadd.f32 %v402, %v406
        %v411 = vadd.f32 %v403, %v407
        %v412 = vld [vmem:[%s2] sm:$0x1]
        %v413 = vld [vmem:[%s3] sm:$0x1]
        %vm414 = vcmask 261120
        %v415 = vsel %vm414, %v408, 0.0
        %416 = vadd.xlane.f32.xlu0 %v415
        %v417 = vpop.xlane.xlu0 %416
        %v418 = vsel %vm414, %v409, 0.0
        %419 = vadd.xlane.f32.xlu0 %v418
        %v420 = vpop.xlane.xlu0 %419
        %v421 = vsel %vm414, %v410, 0.0
        %422 = vadd.xlane.f32.xlu0 %v421
        %v423 = vpop.xlane.xlu0 %422
        %v424 = vsel %vm414, %v411, 0.0
        %425 = vadd.xlane.f32.xlu0 %v424
        %v426 = vpop.xlane.xlu0 %425
        %v427 = vrcp.pop 32.0
        %v428 = vmul.f32 %v417, %v427
        %v429 = vmul.f32 %v420, %v427
        %v430 = vmul.f32 %v423, %v427
        %v431 = vmul.f32 %v426, %v427
        %v432 = vsub.f32 %v408, %v428
        %v433 = vsub.f32 %v409, %v429
        %v434 = vsub.f32 %v410, %v430
        %v435 = vsub.f32 %v411, %v431
        %v436 = vmul.f32 %v432, %v432
        %v437 = vmul.f32 %v433, %v433
        %v438 = vmul.f32 %v434, %v434
        %v439 = vmul.f32 %v435, %v435
        %v440 = vsel %vm414, %v436, 0.0
        %441 = vadd.xlane.f32.xlu0 %v440
        %v442 = vpop.xlane.xlu0 %441
        %v443 = vsel %vm414, %v437, 0.0
        %444 = vadd.xlane.f32.xlu0 %v443
        %v445 = vpop.xlane.xlu0 %444
        %v446 = vsel %vm414, %v438, 0.0
        %447 = vadd.xlane.f32.xlu0 %v446
        %v448 = vpop.xlane.xlu0 %447
        %v449 = vsel %vm414, %v439, 0.0
        %450 = vadd.xlane.f32.xlu0 %v449
        %v451 = vpop.xlane.xlu0 %450
        %v452 = vmul.f32 %v442, %v427
        %v453 = vmul.f32 %v445, %v427
        %v454 = vmul.f32 %v448, %v427
        %v455 = vmul.f32 %v451, %v427
        %v456 = vadd.f32 %v452, 1e-05
        %v457 = vadd.f32 %v453, 1e-05
        %v458 = vadd.f32 %v454, 1e-05
        %v459 = vadd.f32 %v455, 1e-05
        %v460 = vrsqrt.pop %v456
        %v461 = vrsqrt.pop %v457
        %v462 = vrsqrt.pop %v458
        %v463 = vrsqrt.pop %v459
        %v464 = vmul.f32 %v432, %v460
        %v465 = vmul.f32 %v433, %v461
        %v466 = vmul.f32 %v434, %v462
        %v467 = vmul.f32 %v435, %v463
        %v469 = vlaneseq
        %v470 = vshrl.u32 %v469, 7
        %v471 = vsub.s32 0, %v470
        %v472 = vrot.slane %v412, %v471
        %v474 = vmul.f32 %v464, %v472
        %v475 = vmul.f32 %v465, %v472
        %v476 = vmul.f32 %v466, %v472
        %v477 = vmul.f32 %v467, %v472
        %v479 = vlaneseq
        %v480 = vshrl.u32 %v479, 7
        %v481 = vsub.s32 0, %v480
        %v482 = vrot.slane %v413, %v481
        %v484 = vadd.f32 %v474, %v482
        %v485 = vadd.f32 %v475, %v482
        %v486 = vadd.f32 %v476, %v482
        %v487 = vadd.f32 %v477, %v482
        %488 = vst.msk [vmem:[#allocation2] sm:$0xff] %vm414, %v484
        %489 = vst.msk [vmem:[#allocation2 + $0x8] sm:$0xff] %vm414, %v485
        %490 = vst.msk [vmem:[#allocation2 + $0x10] sm:$0xff] %vm414, %v486
        %491 = vst.msk [vmem:[#allocation2 + $0x18] sm:$0xff] %vm414, %v487
        %492 = vst.msk [vmem:[#allocation3] sm:$0xff] %vm414, 0.0
        %493 = vst.msk [vmem:[#allocation3 + $0x8] sm:$0xff] %vm414, 0.0
        %494 = vst.msk [vmem:[#allocation3 + $0x10] sm:$0xff] %vm414, 0.0
        %495 = vst.msk [vmem:[#allocation3 + $0x18] sm:$0xff] %vm414, 0.0
      $region56: #{recurrent_residual_block.3} parent=51 // pred_fallthru
        _
      %v496 = vld [vmem:[#allocation2] sm:$0xff]
      %v497 = vld [vmem:[#allocation2 + $0x8] sm:$0xff]
      %v498 = vld [vmem:[#allocation2 + $0x10] sm:$0xff]
      %v499 = vld [vmem:[#allocation2 + $0x18] sm:$0xff]
      %v500 = vld [vmem:[%s380] sm:$0xff]
      %v501 = vld [vmem:[%s380 + $0x8] sm:$0xff]
      %v502 = vld [vmem:[%s380 + $0x10] sm:$0xff]
      %v503 = vld [vmem:[%s380 + $0x18] sm:$0xff]
      %v504 = vld [vmem:[%s383] sm:$0x1]
      %v506 = vlaneseq
      %v507 = vshrl.u32 %v506, 7
      %v508 = vsub.s32 0, %v507
      %v509 = vrot.slane %v504, %v508
      %vm511 = vcmask 261120
      %v513 = vsel %vm511, %v496, 0
      %v516 = vsel %vm511, %v497, 0
      %v519 = vsel %vm511, %v498, 0
      %v522 = vsel %vm511, %v499, 0
      %524 = vmatprep.subr.mxu0 0.0
      %525 = vmatpush1.msra.mxu0 0.0
      %526 = vmatprep.subr.mxu0 0.0
      %527 = vmatpush1.msra.mxu0 0.0
      %528 = vmatprep.subr.mxu0 0.0
      %529 = vmatpush1.msra.mxu0 0.0
      %530 = vmatprep.subr.mxu0 0.0
      %531 = vmatpush1.msra.mxu0 0.0
      %532 = vmatprep.subr.mxu0 0.0
      %533 = vmatpush1.msra.mxu0 0.0
      %534 = vmatprep.subr.mxu0 0.0
      %535 = vmatpush1.msra.mxu0 0.0
      %536 = vmatprep.subr.mxu0 0.0
      %537 = vmatpush1.msra.mxu0 0.0
      %538 = vmatprep.subr.mxu0 0.0
      %539 = vmatpush1.msra.mxu0 0.0
      %540 = vmatprep.subr.mxu0 0.0
      %541 = vmatpush1.msra.mxu0 0.0
      %542 = vmatprep.subr.mxu0 0.0
      %543 = vmatpush1.msra.mxu0 0.0
      %544 = vmatprep.subr.mxu0 0.0
      %545 = vmatpush1.msra.mxu0 0.0
      %546 = vmatprep.subr.mxu0 0.0
      %547 = vmatpush1.msra.mxu0 0.0
      %548 = vmatprep.subr.mxu0 0.0
      %549 = vmatpush1.msra.mxu0 %v503
      %550 = vmatprep.subr.mxu0 0.0
      %551 = vmatpush1.msra.mxu0 %v502
      %552 = vmatprep.subr.mxu0 0.0
      %553 = vmatpush1.msra.mxu0 %v501
      %554 = vmatprep.subr.mxu0 0.0
      %555 = vmatpush1.msra.mxu0 %v500
      %556 = vmatprep.subr.mxu0 0.0
      %557 = vmatpush2.msra.mxu0 0.0
      %558 = vmatprep.subr.mxu0 0.0
      %559 = vmatpush2.msra.mxu0 0.0
      %560 = vmatprep.subr.mxu0 0.0
      %561 = vmatpush2.msra.mxu0 0.0
      %562 = vmatprep.subr.mxu0 0.0
      %563 = vmatpush2.msra.mxu0 0.0
      %564 = vmatprep.subr.mxu0 0.0
      %565 = vmatpush2.msra.mxu0 0.0
      %566 = vmatprep.subr.mxu0 0.0
      %567 = vmatpush2.msra.mxu0 0.0
      %568 = vmatprep.subr.mxu0 0.0
      %569 = vmatpush2.msra.mxu0 0.0
      %570 = vmatprep.subr.mxu0 0.0
      %571 = vmatpush2.msra.mxu0 0.0
      %572 = vmatprep.subr.mxu0 0.0
      %573 = vmatpush2.msra.mxu0 0.0
      %574 = vmatprep.subr.mxu0 0.0
      %575 = vmatpush2.msra.mxu0 0.0
      %576 = vmatprep.subr.mxu0 0.0
      %577 = vmatpush2.msra.mxu0 0.0
      %578 = vmatprep.subr.mxu0 0.0
      %579 = vmatpush2.msra.mxu0 0.0
      %580 = vmatprep.subr.mxu0 0.0
      %581 = vmatpush2.msra.mxu0 0.0
      %582 = vmatprep.subr.mxu0 0.0
      %583 = vmatpush2.msra.mxu0 0.0
      %584 = vmatprep.subr.mxu0 0.0
      %585 = vmatpush2.msra.mxu0 0.0
      %586 = vmatprep.subr.mxu0 0.0
      %587 = vmatpush2.msra.mxu0 0.0
      %588 = vmatprep.mubr.f32.mxu0 0.0
      %589 = vmatmul.mubr.f32.gmra.mxu0 %v513
      %v590 = vpop.f32.mrf.mxu0
      %v591 = vadd.f32 %v509, %v590
      %v592 = vpop.f32.mrf.mxu0
      %593 = vmatprep.mubr.f32.mxu0 0.0
      %594 = vmatmul.mubr.f32.gmra.mxu0 %v516
      %v595 = vpop.f32.mrf.mxu0
      %v596 = vadd.f32 %v509, %v595
      %v597 = vpop.f32.mrf.mxu0
      %598 = vmatprep.mubr.f32.mxu0 0.0
      %599 = vmatmul.mubr.f32.gmra.mxu0 %v519
      %v600 = vpop.f32.mrf.mxu0
      %v601 = vadd.f32 %v509, %v600
      %v602 = vpop.f32.mrf.mxu0
      %603 = vmatprep.mubr.f32.mxu0 0.0
      %604 = vmatmul.mubr.f32.gmra.mxu0 %v522
      %v605 = vpop.f32.mrf.mxu0
      %v606 = vadd.f32 %v509, %v605
      %v607 = vpop.f32.mrf.mxu0
      %608 = vdwg.mxu0
      %v609 = vld [vmem:[#allocation3] sm:$0xff]
      %v610 = vld [vmem:[#allocation3 + $0x8] sm:$0xff]
      %v611 = vld [vmem:[#allocation3 + $0x10] sm:$0xff]
      %v612 = vld [vmem:[#allocation3 + $0x18] sm:$0xff]
      %v613 = vmul.f32 %v591, 0.5
      %v614 = vmul.f32 %v596, 0.5
      %v615 = vmul.f32 %v601, 0.5
      %v616 = vmul.f32 %v606, 0.5
      %v617 = vmul.f32 %v591, 0.70710677
      %v618 = vmul.f32 %v596, 0.70710677
      %v619 = vmul.f32 %v601, 0.70710677
      %v620 = vmul.f32 %v606, 0.70710677
      %v621 = vand.u32 2147483647, %v617
      %v622 = vand.u32 2147483647, %v618
      %v623 = vand.u32 2147483647, %v619
      %v624 = vand.u32 2147483647, %v620
      %v625 = vmul.f32 %v621, 0.3275911
      %v626 = vmul.f32 %v622, 0.3275911
      %v627 = vmul.f32 %v623, 0.3275911
      %v628 = vmul.f32 %v624, 0.3275911
      %v629 = vadd.f32 %v625, 1.0
      %v630 = vadd.f32 %v626, 1.0
      %v631 = vadd.f32 %v627, 1.0
      %v632 = vadd.f32 %v628, 1.0
      %v633 = vrcp.pop %v629
      %v634 = vmul.f32 1.0, %v633
      %v635 = vrcp.pop %v630
      %v636 = vmul.f32 1.0, %v635
      %v637 = vrcp.pop %v631
      %v638 = vmul.f32 1.0, %v637
      %v639 = vrcp.pop %v632
      %v640 = vmul.f32 1.0, %v639
      %v641 = vmul.f32 %v634, 1.0614054
      %v642 = vmul.f32 %v636, 1.0614054
      %v643 = vmul.f32 %v638, 1.0614054
      %v644 = vmul.f32 %v640, 1.0614054
      %v645 = vadd.f32 %v641, -1.4531521
      %v646 = vadd.f32 %v642, -1.4531521
      %v647 = vadd.f32 %v643, -1.4531521
      %v648 = vadd.f32 %v644, -1.4531521
      %v649 = vmul.f32 %v645, %v634
      %v650 = vmul.f32 %v646, %v636
      %v651 = vmul.f32 %v647, %v638
      %v652 = vmul.f32 %v648, %v640
      %v653 = vadd.f32 %v649, 1.4214138
      %v654 = vadd.f32 %v650, 1.4214138
      %v655 = vadd.f32 %v651, 1.4214138
      %v656 = vadd.f32 %v652, 1.4214138
      %v657 = vmul.f32 %v653, %v634
      %v658 = vmul.f32 %v654, %v636
      %v659 = vmul.f32 %v655, %v638
      %v660 = vmul.f32 %v656, %v640
      %v661 = vadd.f32 %v657, -0.28449672
      %v662 = vadd.f32 %v658, -0.28449672
      %v663 = vadd.f32 %v659, -0.28449672
      %v664 = vadd.f32 %v660, -0.28449672
      %v665 = vmul.f32 %v661, %v634
      %v666 = vmul.f32 %v662, %v636
      %v667 = vmul.f32 %v663, %v638
      %v668 = vmul.f32 %v664, %v640
      %v669 = vadd.f32 %v665, 0.2548296
      %v670 = vadd.f32 %v666, 0.2548296
      %v671 = vadd.f32 %v667, 0.2548296
      %v672 = vadd.f32 %v668, 0.2548296
      %v673 = vmul.f32 %v669, %v634
      %v674 = vmul.f32 %v670, %v636
      %v675 = vmul.f32 %v671, %v638
      %v676 = vmul.f32 %v672, %v640
      %v677 = vsub.f32 0.0, %v621
      %v678 = vsub.f32 0.0, %v622
      %v679 = vsub.f32 0.0, %v623
      %v680 = vsub.f32 0.0, %v624
      %v681 = vmul.f32 %v677, %v621
      %v682 = vmul.f32 %v678, %v622
      %v683 = vmul.f32 %v679, %v623
      %v684 = vmul.f32 %v680, %v624
      %v685 = vmul.f32 %v681, 1.442695
      %v686 = vpow.pop %v685
      %v687 = vmul.f32 %v682, 1.442695
      %v688 = vpow.pop %v687
      %v689 = vmul.f32 %v683, 1.442695
      %v690 = vpow.pop %v689
      %v691 = vmul.f32 %v684, 1.442695
      %v692 = vpow.pop %v691
      %v693 = vmul.f32 %v673, %v686
      %v694 = vmul.f32 %v674, %v688
      %v695 = vmul.f32 %v675, %v690
      %v696 = vmul.f32 %v676, %v692
      %v697 = vsub.f32 1.0, %v693
      %v698 = vsub.f32 1.0, %v694
      %v699 = vsub.f32 1.0, %v695
      %v700 = vsub.f32 1.0, %v696
      %vm701 = vcmp.ge.f32.partialorder %v617, 0.0
      %vm702 = vcmp.ge.f32.partialorder %v618, 0.0
      %vm703 = vcmp.ge.f32.partialorder %v619, 0.0
      %vm704 = vcmp.ge.f32.partialorder %v620, 0.0
      %v705 = vsub.f32 0.0, %v697
      %v706 = vsub.f32 0.0, %v698
      %v707 = vsub.f32 0.0, %v699
      %v708 = vsub.f32 0.0, %v700
      %v709 = vsel %vm701, %v697, %v705
      %v710 = vsel %vm702, %v698, %v706
      %v711 = vsel %vm703, %v699, %v707
      %v712 = vsel %vm704, %v700, %v708
      %v713 = vadd.f32 %v709, 1.0
      %v714 = vadd.f32 %v710, 1.0
      %v715 = vadd.f32 %v711, 1.0
      %v716 = vadd.f32 %v712, 1.0
      %v717 = vmul.f32 %v613, %v713
      %v718 = vmul.f32 %v614, %v714
      %v719 = vmul.f32 %v615, %v715
      %v720 = vmul.f32 %v616, %v716
      %v721 = vld [vmem:[%s388] sm:$0xff]
      %v722 = vld [vmem:[%s388 + $0x8] sm:$0xff]
      %v723 = vld [vmem:[%s388 + $0x10] sm:$0xff]
      %v724 = vld [vmem:[%s388 + $0x18] sm:$0xff]
      %v725 = vld [vmem:[%s388 + $0x20] sm:$0xff]
      %v726 = vld [vmem:[%s388 + $0x28] sm:$0xff]
      %v727 = vld [vmem:[%s388 + $0x30] sm:$0xff]
      %v728 = vld [vmem:[%s388 + $0x38] sm:$0xff]
      %v729 = vld [vmem:[%s388 + $0x40] sm:$0xff]
      %v730 = vld [vmem:[%s388 + $0x48] sm:$0xff]
      %v731 = vld [vmem:[%s388 + $0x50] sm:$0xff]
      %v732 = vld [vmem:[%s388 + $0x58] sm:$0xff]
      %v733 = vld [vmem:[%s388 + $0x60] sm:$0xff]
      %v734 = vld [vmem:[%s388 + $0x68] sm:$0xff]
      %v735 = vld [vmem:[%s388 + $0x70] sm:$0xff]
      %v736 = vld [vmem:[%s388 + $0x78] sm:$0xff]
      %737 = vmatprep.subr.mxu0 0.0
      %738 = vmatpush1.msra.mxu0 %v736
      %739 = vmatprep.subr.mxu0 0.0
      %740 = vmatpush1.msra.mxu0 %v735
      %741 = vmatprep.subr.mxu0 0.0
      %742 = vmatpush1.msra.mxu0 %v734
      %743 = vmatprep.subr.mxu0 0.0
      %744 = vmatpush1.msra.mxu0 %v733
      %745 = vmatprep.subr.mxu0 0.0
      %746 = vmatpush1.msra.mxu0 %v732
      %747 = vmatprep.subr.mxu0 0.0
      %748 = vmatpush1.msra.mxu0 %v731
      %749 = vmatprep.subr.mxu0 0.0
      %750 = vmatpush1.msra.mxu0 %v730
      %751 = vmatprep.subr.mxu0 0.0
      %752 = vmatpush1.msra.mxu0 %v729
      %753 = vmatprep.subr.mxu0 0.0
      %754 = vmatpush1.msra.mxu0 %v728
      %755 = vmatprep.subr.mxu0 0.0
      %756 = vmatpush1.msra.mxu0 %v727
      %757 = vmatprep.subr.mxu0 0.0
      %758 = vmatpush1.msra.mxu0 %v726
      %759 = vmatprep.subr.mxu0 0.0
      %760 = vmatpush1.msra.mxu0 %v725
      %761 = vmatprep.subr.mxu0 0.0
      %762 = vmatpush1.msra.mxu0 %v724
      %763 = vmatprep.subr.mxu0 0.0
      %764 = vmatpush1.msra.mxu0 %v723
      %765 = vmatprep.subr.mxu0 0.0
      %766 = vmatpush1.msra.mxu0 %v722
      %767 = vmatprep.subr.mxu0 0.0
      %768 = vmatpush1.msra.mxu0 %v721
      %769 = vmatprep.subr.mxu0 0.0
      %770 = vmatpush2.msra.mxu0 0.0
      %771 = vmatprep.subr.mxu0 0.0
      %772 = vmatpush2.msra.mxu0 0.0
      %773 = vmatprep.subr.mxu0 0.0
      %774 = vmatpush2.msra.mxu0 0.0
      %775 = vmatprep.subr.mxu0 0.0
      %776 = vmatpush2.msra.mxu0 0.0
      %777 = vmatprep.subr.mxu0 0.0
      %778 = vmatpush2.msra.mxu0 0.0
      %779 = vmatprep.subr.mxu0 0.0
      %780 = vmatpush2.msra.mxu0 0.0
      %781 = vmatprep.subr.mxu0 0.0
      %782 = vmatpush2.msra.mxu0 0.0
      %783 = vmatprep.subr.mxu0 0.0
      %784 = vmatpush2.msra.mxu0 0.0
      %785 = vmatprep.subr.mxu0 0.0
      %786 = vmatpush2.msra.mxu0 0.0
      %787 = vmatprep.subr.mxu0 0.0
      %788 = vmatpush2.msra.mxu0 0.0
      %789 = vmatprep.subr.mxu0 0.0
      %790 = vmatpush2.msra.mxu0 0.0
      %791 = vmatprep.subr.mxu0 0.0
      %792 = vmatpush2.msra.mxu0 0.0
      %793 = vmatprep.subr.mxu0 0.0
      %794 = vmatpush2.msra.mxu0 0.0
      %795 = vmatprep.subr.mxu0 0.0
      %796 = vmatpush2.msra.mxu0 0.0
      %797 = vmatprep.subr.mxu0 0.0
      %798 = vmatpush2.msra.mxu0 0.0
      %799 = vmatprep.subr.mxu0 0.0
      %800 = vmatpush2.msra.mxu0 0.0
      %801 = vmatprep.mubr.f32.mxu0 0.0
      %802 = vmatmul.mubr.f32.gmra.mxu0 %v717
      %v803 = vpop.f32.mrf.mxu0
      %v804 = vadd.f32 0.0, %v803
      %v805 = vpop.f32.mrf.mxu0
      %806 = vmatprep.mubr.f32.mxu0 0.0
      %807 = vmatmul.mubr.f32.gmra.mxu0 %v718
      %v808 = vpop.f32.mrf.mxu0
      %v809 = vadd.f32 0.0, %v808
      %v810 = vpop.f32.mrf.mxu0
      %811 = vmatprep.mubr.f32.mxu0 0.0
      %812 = vmatmul.mubr.f32.gmra.mxu0 %v719
      %v813 = vpop.f32.mrf.mxu0
      %v814 = vadd.f32 0.0, %v813
      %v815 = vpop.f32.mrf.mxu0
      %816 = vmatprep.mubr.f32.mxu0 0.0
      %817 = vmatmul.mubr.f32.gmra.mxu0 %v720
      %v818 = vpop.f32.mrf.mxu0
      %v819 = vadd.f32 0.0, %v818
      %v820 = vpop.f32.mrf.mxu0
      %821 = vdwg.mxu0
      %v822 = vadd.f32 %v609, %v804
      %v823 = vadd.f32 %v610, %v809
      %v824 = vadd.f32 %v611, %v814
      %v825 = vadd.f32 %v612, %v819
      %826 = vst.msk [vmem:[#allocation3] sm:$0xff] %vm511, %v822
      %827 = vst.msk [vmem:[#allocation3 + $0x8] sm:$0xff] %vm511, %v823
      %828 = vst.msk [vmem:[#allocation3 + $0x10] sm:$0xff] %vm511, %v824
      %829 = vst.msk [vmem:[#allocation3 + $0x18] sm:$0xff] %vm511, %v825
      // Predicated region
      $region57: #{recurrent_residual_block.3} parent=51 // pred_check
        %p830 = pneg %p396
      $region58: #{recurrent_residual_block.3} parent=51 // pred_check_branch
        %832 = sbr.rel (%p830) target = $region60
      $region59: #{recurrent_residual_block.3} parent=51 // pred_region
        %v833 = vld [vmem:[%s369] sm:$0xff]
        %v834 = vld [vmem:[%s369 + $0x8] sm:$0xff]
        %v835 = vld [vmem:[%s369 + $0x10] sm:$0xff]
        %v836 = vld [vmem:[%s369 + $0x18] sm:$0xff]
        %v837 = vld [vmem:[%s375] sm:$0xff]
        %v838 = vld [vmem:[%s375 + $0x8] sm:$0xff]
        %v839 = vld [vmem:[%s375 + $0x10] sm:$0xff]
        %v840 = vld [vmem:[%s375 + $0x18] sm:$0xff]
        %v841 = vadd.f32 %v833, %v837
        %v842 = vadd.f32 %v834, %v838
        %v843 = vadd.f32 %v835, %v839
        %v844 = vadd.f32 %v836, %v840
        %v845 = vld [vmem:[#allocation3] sm:$0xff]
        %v846 = vld [vmem:[#allocation3 + $0x8] sm:$0xff]
        %v847 = vld [vmem:[#allocation3 + $0x10] sm:$0xff]
        %v848 = vld [vmem:[#allocation3 + $0x18] sm:$0xff]
        %v849 = vadd.f32 %v841, %v845
        %v850 = vadd.f32 %v842, %v846
        %v851 = vadd.f32 %v843, %v847
        %v852 = vadd.f32 %v844, %v848
        %v853 = vld [vmem:[%s7] sm:$0x1]
        %v855 = vlaneseq
        %v856 = vshrl.u32 %v855, 7
        %v857 = vsub.s32 0, %v856
        %v858 = vrot.slane %v853, %v857
        %v860 = vadd.f32 %v849, %v858
        %v861 = vadd.f32 %v850, %v858
        %v862 = vadd.f32 %v851, %v858
        %v863 = vadd.f32 %v852, %v858
        %864 = vst.msk [vmem:[%s394] sm:$0xff] %vm511, %v860
        %865 = vst.msk [vmem:[%s394 + $0x8] sm:$0xff] %vm511, %v861
        %866 = vst.msk [vmem:[%s394 + $0x10] sm:$0xff] %vm511, %v862
        %867 = vst.msk [vmem:[%s394 + $0x18] sm:$0xff] %vm511, %v863
      $region60: #{recurrent_residual_block.3} parent=51 // pred_fallthru
        _
      %s868 = smul.u32 4, %s23
      %p869 = scmp.lt.s32.totalorder %s868, 7
      %s870 = scalar_select %p869, %s868, 7
      %s871 = smul.addr %s870, 8
      %s872 = scalar_lea.vmem %s8, %s871
      // Predicated region
      $region61: #{recurrent_residual_block.3} parent=51 // pred_check
        %p873 = pneg %p242
      $region62: #{recurrent_residual_block.3} parent=51 // pred_check_branch
        %875 = sbr.rel (%p873) target = $region64
      $region63: #{recurrent_residual_block.3} parent=51 // pred_region
        %s876 = smul.u32 4, %s23
      $region64: #{recurrent_residual_block.3} parent=51 // pred_fallthru
        _
    $region52: #{recurrent_residual_block.3} parent=5 // pred_fallthru
      _
    %p877 = scmp.le.s32.totalorder 2, %s14
    // Predicated region
    $region65: #{recurrent_residual_block.3} parent=5 // pred_check
      %p878 = pneg %p877
    $region66: #{recurrent_residual_block.3} parent=5 // pred_check_branch
      %880 = sbr.rel (%p878) target = $region68
    $region67: #{recurrent_residual_block.3} parent=5 // pred_region
      %s881 = ssub.s32 %s14, 2
      // Predicated region
      $region69: #{recurrent_residual_block.3} parent=67 // pred_check
        %p882 = pneg %p248
      $region70: #{recurrent_residual_block.3} parent=67 // pred_check_branch
        %884 = sbr.rel (%p882) target = $region72
      $region71: #{recurrent_residual_block.3} parent=67 // pred_region
        %s885 = smul.u32 4, %s25
        %p886 = scmp.lt.s32.totalorder %s885, 7
        %s887 = scalar_select %p886, %s885, 7
        %s888 = smul.addr %s887, 8
        %s889 = scalar_lea.vmem %s8, %s888
      $region72: #{recurrent_residual_block.3} parent=67 // pred_fallthru
        _
    $region68: #{recurrent_residual_block.3} parent=5 // pred_fallthru
      _
  $region6: #{recurrent_residual_block.3} parent=0 // loop_footer
    %s18 = sadd.s32 1, %s14
  $region7: #{recurrent_residual_block.3} parent=0 // loop_footer_branch
    %13 = sbr.rel target = $region3
  $region8: #{recurrent_residual_block.3} parent=0 // loop_exit
    _

// kernel: recurrent_residual_block.2
$region0: #{recurrent_residual_block.2}
  #allocation0 [shape = 'u32[]', space=smem, size = 0x4, offset = 0x4, fixed_abs, tag = 'smem constant byte address 0x4 - core index']
  #allocation1 [shape = 'u32[144,128]{1,0:T(1,128)}', space=vmem, size = 0x12000, scoped, tag = 'internal scratch']
  #allocation2 [shape = 'f32[64,128]{1,0:T(8,128)}', space=vmem, size = 0x8000, scoped, tag = 'scratch operand']
  %s0 = inlined_call_operand.vmem [shape: f32[64,32], index: 0, kind: input, shape index: {}]
  %s1 = inlined_call_operand.vmem [shape: f32[1,32], index: 1, kind: input, shape index: {}]
  %s2 = inlined_call_operand.vmem [shape: f32[1,32], index: 2, kind: input, shape index: {}]
  %s3 = inlined_call_operand.vmem [shape: f32[32,128], index: 3, kind: input, shape index: {}]
  %s4 = inlined_call_operand.vmem [shape: f32[1,128], index: 4, kind: input, shape index: {}]
  %s5 = inlined_call_operand.vmem [shape: f32[8,32], index: 5, kind: input, shape index: {}]
  %s6 = inlined_call_operand.vmem [shape: f32[8,32], index: 6, kind: input, shape index: {}]
  %s7 = inlined_call_operand.vmem [shape: f32[32,128], index: 7, kind: input, shape index: {}]
  %s8 = inlined_call_operand.vmem [shape: f32[64,32], index: 8, kind: output, shape index: {0}]
  %s9 = inlined_call_operand.vmem [shape: f32[8,32], index: 9, kind: output, shape index: {1}]
  %s10 = inlined_call_operand.vmem [shape: f32[8,32], index: 10, kind: output, shape index: {2}]
  %11 = xla_tuple %s8, %s9, %s10
  %s12 = sld [smem:[#allocation0]]
  $region62: #{recurrent_residual_block.2} parent=0
    _
  %s14 = ssub.s32 1, %s12
  %s15 = scalar_select 0, %s14, %s12
  // Predicated region
  $region2: #{recurrent_residual_block.2} parent=0 // pred_check
    _
  $region3: #{recurrent_residual_block.2} parent=0 // pred_check_branch
    %17 = sbr.rel (0) target = $region5
  $region4: #{recurrent_residual_block.2} parent=0 // pred_region
    _
  $region5: #{recurrent_residual_block.2} parent=0 // pred_fallthru
    _
  // Predicated region
  $region6: #{recurrent_residual_block.2} parent=0 // pred_check
    _
  $region7: #{recurrent_residual_block.2} parent=0 // pred_check_branch
    %19 = sbr.rel (0) target = $region9
  $region8: #{recurrent_residual_block.2} parent=0 // pred_region
    _
  $region9: #{recurrent_residual_block.2} parent=0 // pred_fallthru
    _
  // Predicated region
  $region10: #{recurrent_residual_block.2} parent=0 // pred_check
    _
  $region11: #{recurrent_residual_block.2} parent=0 // pred_check_branch
    %21 = sbr.rel (0) target = $region13
  $region12: #{recurrent_residual_block.2} parent=0 // pred_region
    _
  $region13: #{recurrent_residual_block.2} parent=0 // pred_fallthru
    _
  // Predicated region
  $region14: #{recurrent_residual_block.2} parent=0 // pred_check
    _
  $region15: #{recurrent_residual_block.2} parent=0 // pred_check_branch
    %23 = sbr.rel (0) target = $region17
  $region16: #{recurrent_residual_block.2} parent=0 // pred_region
    _
  $region17: #{recurrent_residual_block.2} parent=0 // pred_fallthru
    _
  // Predicated region
  $region18: #{recurrent_residual_block.2} parent=0 // pred_check
    _
  $region19: #{recurrent_residual_block.2} parent=0 // pred_check_branch
    %25 = sbr.rel (0) target = $region21
  $region20: #{recurrent_residual_block.2} parent=0 // pred_region
    _
  $region21: #{recurrent_residual_block.2} parent=0 // pred_fallthru
    _
  // Predicated region
  $region22: #{recurrent_residual_block.2} parent=0 // pred_check
    _
  $region23: #{recurrent_residual_block.2} parent=0 // pred_check_branch
    %27 = sbr.rel (0) target = $region25
  $region24: #{recurrent_residual_block.2} parent=0 // pred_region
    _
  $region25: #{recurrent_residual_block.2} parent=0 // pred_fallthru
    _
  // Predicated region
  $region26: #{recurrent_residual_block.2} parent=0 // pred_check
    _
  $region27: #{recurrent_residual_block.2} parent=0 // pred_check_branch
    %29 = sbr.rel (0) target = $region29
  $region28: #{recurrent_residual_block.2} parent=0 // pred_region
    _
  $region29: #{recurrent_residual_block.2} parent=0 // pred_fallthru
    _
  // Predicated region
  $region30: #{recurrent_residual_block.2} parent=0 // pred_check
    _
  $region31: #{recurrent_residual_block.2} parent=0 // pred_check_branch
    %31 = sbr.rel (0) target = $region33
  $region32: #{recurrent_residual_block.2} parent=0 // pred_region
    _
  $region33: #{recurrent_residual_block.2} parent=0 // pred_fallthru
    _
  %p32 = scmp.eq.s32.totalorder 0, 0
  // Predicated region
  $region34: #{recurrent_residual_block.2} parent=0 // pred_check
    %p33 = pneg %p32
  $region35: #{recurrent_residual_block.2} parent=0 // pred_check_branch
    %35 = sbr.rel (%p33) target = $region37
  $region36: #{recurrent_residual_block.2} parent=0 // pred_region
    %v36 = vld [vmem:[%s5] sm:$0xff]
    %vm37 = vcmask 261120
    %38 = vst.msk [vmem:[%s9] sm:$0xff] %vm37, %v36
    %v39 = vld [vmem:[%s6] sm:$0xff]
    %40 = vst.msk [vmem:[%s10] sm:$0xff] %vm37, %v39
  $region37: #{recurrent_residual_block.2} parent=0 // pred_fallthru
    _
  %v41 = vld [vmem:[%s0] sm:$0xff]
  %v42 = vld [vmem:[%s0 + $0x8] sm:$0xff]
  %v43 = vld [vmem:[%s0 + $0x10] sm:$0xff]
  %v44 = vld [vmem:[%s0 + $0x18] sm:$0xff]
  %v45 = vld [vmem:[%s0 + $0x20] sm:$0xff]
  %v46 = vld [vmem:[%s0 + $0x28] sm:$0xff]
  %v47 = vld [vmem:[%s0 + $0x30] sm:$0xff]
  %v48 = vld [vmem:[%s0 + $0x38] sm:$0xff]
  %v49 = vld [vmem:[%s1] sm:$0x1]
  %v50 = vld [vmem:[%s2] sm:$0x1]
  %vm51 = vcmask 261120
  %v52 = vsel %vm51, %v41, 0.0
  %53 = vadd.xlane.f32.xlu0 %v52
  %v54 = vpop.xlane.xlu0 %53
  %v55 = vsel %vm51, %v42, 0.0
  %56 = vadd.xlane.f32.xlu0 %v55
  %v57 = vpop.xlane.xlu0 %56
  %v58 = vsel %vm51, %v43, 0.0
  %59 = vadd.xlane.f32.xlu0 %v58
  %v60 = vpop.xlane.xlu0 %59
  %v61 = vsel %vm51, %v44, 0.0
  %62 = vadd.xlane.f32.xlu0 %v61
  %v63 = vpop.xlane.xlu0 %62
  %v64 = vsel %vm51, %v45, 0.0
  %65 = vadd.xlane.f32.xlu0 %v64
  %v66 = vpop.xlane.xlu0 %65
  %v67 = vsel %vm51, %v46, 0.0
  %68 = vadd.xlane.f32.xlu0 %v67
  %v69 = vpop.xlane.xlu0 %68
  %v70 = vsel %vm51, %v47, 0.0
  %71 = vadd.xlane.f32.xlu0 %v70
  %v72 = vpop.xlane.xlu0 %71
  %v73 = vsel %vm51, %v48, 0.0
  %74 = vadd.xlane.f32.xlu0 %v73
  %v75 = vpop.xlane.xlu0 %74
  %v76 = vrcp.pop 32.0
  %v77 = vmul.f32 %v54, %v76
  %v78 = vmul.f32 %v57, %v76
  %v79 = vmul.f32 %v60, %v76
  %v80 = vmul.f32 %v63, %v76
  %v81 = vmul.f32 %v66, %v76
  %v82 = vmul.f32 %v69, %v76
  %v83 = vmul.f32 %v72, %v76
  %v84 = vmul.f32 %v75, %v76
  %v85 = vsub.f32 %v41, %v77
  %v86 = vsub.f32 %v42, %v78
  %v87 = vsub.f32 %v43, %v79
  %v88 = vsub.f32 %v44, %v80
  %v89 = vsub.f32 %v45, %v81
  %v90 = vsub.f32 %v46, %v82
  %v91 = vsub.f32 %v47, %v83
  %v92 = vsub.f32 %v48, %v84
  %v93 = vmul.f32 %v85, %v85
  %v94 = vmul.f32 %v86, %v86
  %v95 = vmul.f32 %v87, %v87
  %v96 = vmul.f32 %v88, %v88
  %v97 = vmul.f32 %v89, %v89
  %v98 = vmul.f32 %v90, %v90
  %v99 = vmul.f32 %v91, %v91
  %v100 = vmul.f32 %v92, %v92
  %v101 = vsel %vm51, %v93, 0.0
  %102 = vadd.xlane.f32.xlu0 %v101
  %v103 = vpop.xlane.xlu0 %102
  %v104 = vsel %vm51, %v94, 0.0
  %105 = vadd.xlane.f32.xlu0 %v104
  %v106 = vpop.xlane.xlu0 %105
  %v107 = vsel %vm51, %v95, 0.0
  %108 = vadd.xlane.f32.xlu0 %v107
  %v109 = vpop.xlane.xlu0 %108
  %v110 = vsel %vm51, %v96, 0.0
  %111 = vadd.xlane.f32.xlu0 %v110
  %v112 = vpop.xlane.xlu0 %111
  %v113 = vsel %vm51, %v97, 0.0
  %114 = vadd.xlane.f32.xlu0 %v113
  %v115 = vpop.xlane.xlu0 %114
  %v116 = vsel %vm51, %v98, 0.0
  %117 = vadd.xlane.f32.xlu0 %v116
  %v118 = vpop.xlane.xlu0 %117
  %v119 = vsel %vm51, %v99, 0.0
  %120 = vadd.xlane.f32.xlu0 %v119
  %v121 = vpop.xlane.xlu0 %120
  %v122 = vsel %vm51, %v100, 0.0
  %123 = vadd.xlane.f32.xlu0 %v122
  %v124 = vpop.xlane.xlu0 %123
  %v125 = vmul.f32 %v103, %v76
  %v126 = vmul.f32 %v106, %v76
  %v127 = vmul.f32 %v109, %v76
  %v128 = vmul.f32 %v112, %v76
  %v129 = vmul.f32 %v115, %v76
  %v130 = vmul.f32 %v118, %v76
  %v131 = vmul.f32 %v121, %v76
  %v132 = vmul.f32 %v124, %v76
  %v133 = vadd.f32 %v125, 1e-05
  %v134 = vadd.f32 %v126, 1e-05
  %v135 = vadd.f32 %v127, 1e-05
  %v136 = vadd.f32 %v128, 1e-05
  %v137 = vadd.f32 %v129, 1e-05
  %v138 = vadd.f32 %v130, 1e-05
  %v139 = vadd.f32 %v131, 1e-05
  %v140 = vadd.f32 %v132, 1e-05
  %v141 = vrsqrt.pop %v133
  %v142 = vrsqrt.pop %v134
  %v143 = vrsqrt.pop %v135
  %v144 = vrsqrt.pop %v136
  %v145 = vrsqrt.pop %v137
  %v146 = vrsqrt.pop %v138
  %v147 = vrsqrt.pop %v139
  %v148 = vrsqrt.pop %v140
  %v149 = vmul.f32 %v85, %v141
  %v150 = vmul.f32 %v86, %v142
  %v151 = vmul.f32 %v87, %v143
  %v152 = vmul.f32 %v88, %v144
  %v153 = vmul.f32 %v89, %v145
  %v154 = vmul.f32 %v90, %v146
  %v155 = vmul.f32 %v91, %v147
  %v156 = vmul.f32 %v92, %v148
  %v158 = vlaneseq
  %v159 = vshrl.u32 %v158, 7
  %v160 = vsub.s32 0, %v159
  %v161 = vrot.slane %v49, %v160
  %v163 = vmul.f32 %v149, %v161
  %v164 = vmul.f32 %v150, %v161
  %v165 = vmul.f32 %v151, %v161
  %v166 = vmul.f32 %v152, %v161
  %v167 = vmul.f32 %v153, %v161
  %v168 = vmul.f32 %v154, %v161
  %v169 = vmul.f32 %v155, %v161
  %v170 = vmul.f32 %v156, %v161
  %v172 = vlaneseq
  %v173 = vshrl.u32 %v172, 7
  %v174 = vsub.s32 0, %v173
  %v175 = vrot.slane %v50, %v174
  %v177 = vadd.f32 %v163, %v175
  %v178 = vadd.f32 %v164, %v175
  %v179 = vadd.f32 %v165, %v175
  %v180 = vadd.f32 %v166, %v175
  %v181 = vadd.f32 %v167, %v175
  %v182 = vadd.f32 %v168, %v175
  %v183 = vadd.f32 %v169, %v175
  %v184 = vadd.f32 %v170, %v175
  %v185 = vld [vmem:[%s3] sm:$0xff]
  %v186 = vld [vmem:[%s3 + $0x8] sm:$0xff]
  %v187 = vld [vmem:[%s3 + $0x10] sm:$0xff]
  %v188 = vld [vmem:[%s3 + $0x18] sm:$0xff]
  %v189 = vld [vmem:[%s4] sm:$0x1]
  %v191 = vlaneseq
  %v192 = vshrl.u32 %v191, 7
  %v193 = vsub.s32 0, %v192
  %v194 = vrot.slane %v189, %v193
  %v197 = vsel %vm51, %v177, 0
  %v200 = vsel %vm51, %v178, 0
  %v203 = vsel %vm51, %v179, 0
  %v206 = vsel %vm51, %v180, 0
  %v209 = vsel %vm51, %v181, 0
  %v212 = vsel %vm51, %v182, 0
  %v215 = vsel %vm51, %v183, 0
  %v218 = vsel %vm51, %v184, 0
  %220 = vmatprep.subr.mxu0 0.0
  %221 = vmatpush1.msra.mxu0 0.0
  %222 = vmatprep.subr.mxu0 0.0
  %223 = vmatpush1.msra.mxu0 0.0
  %224 = vmatprep.subr.mxu0 0.0
  %225 = vmatpush1.msra.mxu0 0.0
  %226 = vmatprep.subr.mxu0 0.0
  %227 = vmatpush1.msra.mxu0 0.0
  %228 = vmatprep.subr.mxu0 0.0
  %229 = vmatpush1.msra.mxu0 0.0
  %230 = vmatprep.subr.mxu0 0.0
  %231 = vmatpush1.msra.mxu0 0.0
  %232 = vmatprep.subr.mxu0 0.0
  %233 = vmatpush1.msra.mxu0 0.0
  %234 = vmatprep.subr.mxu0 0.0
  %235 = vmatpush1.msra.mxu0 0.0
  %236 = vmatprep.subr.mxu0 0.0
  %237 = vmatpush1.msra.mxu0 0.0
  %238 = vmatprep.subr.mxu0 0.0
  %239 = vmatpush1.msra.mxu0 0.0
  %240 = vmatprep.subr.mxu0 0.0
  %241 = vmatpush1.msra.mxu0 0.0
  %242 = vmatprep.subr.mxu0 0.0
  %243 = vmatpush1.msra.mxu0 0.0
  %244 = vmatprep.subr.mxu0 0.0
  %245 = vmatpush1.msra.mxu0 %v188
  %246 = vmatprep.subr.mxu0 0.0
  %247 = vmatpush1.msra.mxu0 %v187
  %248 = vmatprep.subr.mxu0 0.0
  %249 = vmatpush1.msra.mxu0 %v186
  %250 = vmatprep.subr.mxu0 0.0
  %251 = vmatpush1.msra.mxu0 %v185
  %252 = vmatprep.subr.mxu0 0.0
  %253 = vmatpush2.msra.mxu0 0.0
  %254 = vmatprep.subr.mxu0 0.0
  %255 = vmatpush2.msra.mxu0 0.0
  %256 = vmatprep.subr.mxu0 0.0
  %257 = vmatpush2.msra.mxu0 0.0
  %258 = vmatprep.subr.mxu0 0.0
  %259 = vmatpush2.msra.mxu0 0.0
  %260 = vmatprep.subr.mxu0 0.0
  %261 = vmatpush2.msra.mxu0 0.0
  %262 = vmatprep.subr.mxu0 0.0
  %263 = vmatpush2.msra.mxu0 0.0
  %264 = vmatprep.subr.mxu0 0.0
  %265 = vmatpush2.msra.mxu0 0.0
  %266 = vmatprep.subr.mxu0 0.0
  %267 = vmatpush2.msra.mxu0 0.0
  %268 = vmatprep.subr.mxu0 0.0
  %269 = vmatpush2.msra.mxu0 0.0
  %270 = vmatprep.subr.mxu0 0.0
  %271 = vmatpush2.msra.mxu0 0.0
  %272 = vmatprep.subr.mxu0 0.0
  %273 = vmatpush2.msra.mxu0 0.0
  %274 = vmatprep.subr.mxu0 0.0
  %275 = vmatpush2.msra.mxu0 0.0
  %276 = vmatprep.subr.mxu0 0.0
  %277 = vmatpush2.msra.mxu0 0.0
  %278 = vmatprep.subr.mxu0 0.0
  %279 = vmatpush2.msra.mxu0 0.0
  %280 = vmatprep.subr.mxu0 0.0
  %281 = vmatpush2.msra.mxu0 0.0
  %282 = vmatprep.subr.mxu0 0.0
  %283 = vmatpush2.msra.mxu0 0.0
  %284 = vmatprep.mubr.f32.mxu0 0.0
  %285 = vmatmul.mubr.f32.gmra.mxu0 %v197
  %v286 = vpop.f32.mrf.mxu0
  %v287 = vadd.f32 %v194, %v286
  %v288 = vpop.f32.mrf.mxu0
  %289 = vmatprep.mubr.f32.mxu0 0.0
  %290 = vmatmul.mubr.f32.gmra.mxu0 %v200
  %v291 = vpop.f32.mrf.mxu0
  %v292 = vadd.f32 %v194, %v291
  %v293 = vpop.f32.mrf.mxu0
  %294 = vmatprep.mubr.f32.mxu0 0.0
  %295 = vmatmul.mubr.f32.gmra.mxu0 %v203
  %v296 = vpop.f32.mrf.mxu0
  %v297 = vadd.f32 %v194, %v296
  %v298 = vpop.f32.mrf.mxu0
  %299 = vmatprep.mubr.f32.mxu0 0.0
  %300 = vmatmul.mubr.f32.gmra.mxu0 %v206
  %v301 = vpop.f32.mrf.mxu0
  %v302 = vadd.f32 %v194, %v301
  %v303 = vpop.f32.mrf.mxu0
  %304 = vmatprep.mubr.f32.mxu0 0.0
  %305 = vmatmul.mubr.f32.gmra.mxu0 %v209
  %v306 = vpop.f32.mrf.mxu0
  %v307 = vadd.f32 %v194, %v306
  %v308 = vpop.f32.mrf.mxu0
  %309 = vmatprep.mubr.f32.mxu0 0.0
  %310 = vmatmul.mubr.f32.gmra.mxu0 %v212
  %v311 = vpop.f32.mrf.mxu0
  %v312 = vadd.f32 %v194, %v311
  %v313 = vpop.f32.mrf.mxu0
  %314 = vmatprep.mubr.f32.mxu0 0.0
  %315 = vmatmul.mubr.f32.gmra.mxu0 %v215
  %v316 = vpop.f32.mrf.mxu0
  %v317 = vadd.f32 %v194, %v316
  %v318 = vpop.f32.mrf.mxu0
  %319 = vmatprep.mubr.f32.mxu0 0.0
  %320 = vmatmul.mubr.f32.gmra.mxu0 %v218
  %v321 = vpop.f32.mrf.mxu0
  %v322 = vadd.f32 %v194, %v321
  %v323 = vpop.f32.mrf.mxu0
  %324 = vdwg.mxu0
  %325 = vst [vmem:[#allocation2] sm:$0xff] %v287
  %326 = vst [vmem:[#allocation2 + $0x8] sm:$0xff] %v292
  %327 = vst [vmem:[#allocation2 + $0x10] sm:$0xff] %v297
  %328 = vst [vmem:[#allocation2 + $0x18] sm:$0xff] %v302
  %329 = vst [vmem:[#allocation2 + $0x20] sm:$0xff] %v307
  %330 = vst [vmem:[#allocation2 + $0x28] sm:$0xff] %v312
  %331 = vst [vmem:[#allocation2 + $0x30] sm:$0xff] %v317
  %332 = vst [vmem:[#allocation2 + $0x38] sm:$0xff] %v322
  %v333 = vld [vmem:[%s7] sm:$0xff]
  %v334 = vld [vmem:[%s7 + $0x8] sm:$0xff]
  %v335 = vld [vmem:[%s7 + $0x10] sm:$0xff]
  %v336 = vld [vmem:[%s7 + $0x18] sm:$0xff]
  %v337 = vld [vmem:[%s9] sm:$0xff]
  %v338 = vld [vmem:[%s10] sm:$0xff]
  %v339 = vld [vmem:[#allocation2] sm:$0xff]
  %v341 = vsel %vm51, %v337, 0
  %343 = vmatprep.subr.mxu0 0.0
  %344 = vmatpush1.msra.mxu0 0.0
  %345 = vmatprep.subr.mxu0 0.0
  %346 = vmatpush1.msra.mxu0 0.0
  %347 = vmatprep.subr.mxu0 0.0
  %348 = vmatpush1.msra.mxu0 0.0
  %349 = vmatprep.subr.mxu0 0.0
  %350 = vmatpush1.msra.mxu0 0.0
  %351 = vmatprep.subr.mxu0 0.0
  %352 = vmatpush1.msra.mxu0 0.0
  %353 = vmatprep.subr.mxu0 0.0
  %354 = vmatpush1.msra.mxu0 0.0
  %355 = vmatprep.subr.mxu0 0.0
  %356 = vmatpush1.msra.mxu0 0.0
  %357 = vmatprep.subr.mxu0 0.0
  %358 = vmatpush1.msra.mxu0 0.0
  %359 = vmatprep.subr.mxu0 0.0
  %360 = vmatpush1.msra.mxu0 0.0
  %361 = vmatprep.subr.mxu0 0.0
  %362 = vmatpush1.msra.mxu0 0.0
  %363 = vmatprep.subr.mxu0 0.0
  %364 = vmatpush1.msra.mxu0 0.0
  %365 = vmatprep.subr.mxu0 0.0
  %366 = vmatpush1.msra.mxu0 0.0
  %367 = vmatprep.subr.mxu0 0.0
  %368 = vmatpush1.msra.mxu0 %v336
  %369 = vmatprep.subr.mxu0 0.0
  %370 = vmatpush1.msra.mxu0 %v335
  %371 = vmatprep.subr.mxu0 0.0
  %372 = vmatpush1.msra.mxu0 %v334
  %373 = vmatprep.subr.mxu0 0.0
  %374 = vmatpush1.msra.mxu0 %v333
  %375 = vmatprep.subr.mxu0 0.0
  %376 = vmatpush2.msra.mxu0 0.0
  %377 = vmatprep.subr.mxu0 0.0
  %378 = vmatpush2.msra.mxu0 0.0
  %379 = vmatprep.subr.mxu0 0.0
  %380 = vmatpush2.msra.mxu0 0.0
  %381 = vmatprep.subr.mxu0 0.0
  %382 = vmatpush2.msra.mxu0 0.0
  %383 = vmatprep.subr.mxu0 0.0
  %384 = vmatpush2.msra.mxu0 0.0
  %385 = vmatprep.subr.mxu0 0.0
  %386 = vmatpush2.msra.mxu0 0.0
  %387 = vmatprep.subr.mxu0 0.0
  %388 = vmatpush2.msra.mxu0 0.0
  %389 = vmatprep.subr.mxu0 0.0
  %390 = vmatpush2.msra.mxu0 0.0
  %391 = vmatprep.subr.mxu0 0.0
  %392 = vmatpush2.msra.mxu0 0.0
  %393 = vmatprep.subr.mxu0 0.0
  %394 = vmatpush2.msra.mxu0 0.0
  %395 = vmatprep.subr.mxu0 0.0
  %396 = vmatpush2.msra.mxu0 0.0
  %397 = vmatprep.subr.mxu0 0.0
  %398 = vmatpush2.msra.mxu0 0.0
  %399 = vmatprep.subr.mxu0 0.0
  %400 = vmatpush2.msra.mxu0 0.0
  %401 = vmatprep.subr.mxu0 0.0
  %402 = vmatpush2.msra.mxu0 0.0
  %403 = vmatprep.subr.mxu0 0.0
  %404 = vmatpush2.msra.mxu0 0.0
  %405 = vmatprep.subr.mxu0 0.0
  %406 = vmatpush2.msra.mxu0 0.0
  %407 = vmatprep.mubr.f32.mxu0 0.0
  %408 = vmatmul.mubr.f32.gmra.mxu0 %v341
  %v409 = vpop.f32.mrf.mxu0
  %v410 = vadd.f32 0.0, %v409
  %v411 = vpop.f32.mrf.mxu0
  %412 = vdwg.mxu0
  %v413 = vadd.f32 %v339, %v410
  %v414 = vsub.f32 0.0, %v413
  %v415 = vmul.f32 %v414, 1.442695
  %v416 = vpow.pop %v415
  %v417 = vadd.f32 %v416, 1.0
  %v418 = vrcp.pop %v417
  %v419 = vmul.f32 1.0, %v418
  %v420 = vtanh.pop %v413
  %422 = vrot.lane.b32.xlu0 %v338, 32
  %v423 = vpop.permute.xlu0 %422
  %v425 = vmul.f32 %v419, %v423
  %427 = vrot.lane.b32.xlu0 %v420, 32
  %v428 = vpop.permute.xlu0 %427
  %v430 = vmul.f32 %v419, %v428
  %432 = vrot.lane.b32.xlu0 %v430, 32
  %v433 = vpop.permute.xlu0 %432
  %v435 = vadd.f32 %v425, %v433
  %v436 = vtanh.pop %v435
  %438 = vrot.lane.b32.xlu0 %v436, 32
  %v439 = vpop.permute.xlu0 %438
  %v441 = vmul.f32 %v419, %v439
  %443 = vrot.lane.b32.xlu0 %v441, 64
  %v444 = vpop.permute.xlu0 %443
  %446 = vst.msk [vmem:[%s8] sm:$0xff] %vm51, %v444
  %s447 = scalar_lea.vmem [#allocation2], 8
  %v448 = vld [vmem:[%s447] sm:$0xff]
  %v449 = vsel %vm51, %v444, 0
  %451 = vmatprep.subr.mxu0 0.0
  %452 = vmatpush1.msra.mxu0 0.0
  %453 = vmatprep.subr.mxu0 0.0
  %454 = vmatpush1.msra.mxu0 0.0
  %455 = vmatprep.subr.mxu0 0.0
  %456 = vmatpush1.msra.mxu0 0.0
  %457 = vmatprep.subr.mxu0 0.0
  %458 = vmatpush1.msra.mxu0 0.0
  %459 = vmatprep.subr.mxu0 0.0
  %460 = vmatpush1.msra.mxu0 0.0
  %461 = vmatprep.subr.mxu0 0.0
  %462 = vmatpush1.msra.mxu0 0.0
  %463 = vmatprep.subr.mxu0 0.0
  %464 = vmatpush1.msra.mxu0 0.0
  %465 = vmatprep.subr.mxu0 0.0
  %466 = vmatpush1.msra.mxu0 0.0
  %467 = vmatprep.subr.mxu0 0.0
  %468 = vmatpush1.msra.mxu0 0.0
  %469 = vmatprep.subr.mxu0 0.0
  %470 = vmatpush1.msra.mxu0 0.0
  %471 = vmatprep.subr.mxu0 0.0
  %472 = vmatpush1.msra.mxu0 0.0
  %473 = vmatprep.subr.mxu0 0.0
  %474 = vmatpush1.msra.mxu0 0.0
  %475 = vmatprep.subr.mxu0 0.0
  %476 = vmatpush1.msra.mxu0 %v336
  %477 = vmatprep.subr.mxu0 0.0
  %478 = vmatpush1.msra.mxu0 %v335
  %479 = vmatprep.subr.mxu0 0.0
  %480 = vmatpush1.msra.mxu0 %v334
  %481 = vmatprep.subr.mxu0 0.0
  %482 = vmatpush1.msra.mxu0 %v333
  %483 = vmatprep.subr.mxu0 0.0
  %484 = vmatpush2.msra.mxu0 0.0
  %485 = vmatprep.subr.mxu0 0.0
  %486 = vmatpush2.msra.mxu0 0.0
  %487 = vmatprep.subr.mxu0 0.0
  %488 = vmatpush2.msra.mxu0 0.0
  %489 = vmatprep.subr.mxu0 0.0
  %490 = vmatpush2.msra.mxu0 0.0
  %491 = vmatprep.subr.mxu0 0.0
  %492 = vmatpush2.msra.mxu0 0.0
  %493 = vmatprep.subr.mxu0 0.0
  %494 = vmatpush2.msra.mxu0 0.0
  %495 = vmatprep.subr.mxu0 0.0
  %496 = vmatpush2.msra.mxu0 0.0
  %497 = vmatprep.subr.mxu0 0.0
  %498 = vmatpush2.msra.mxu0 0.0
  %499 = vmatprep.subr.mxu0 0.0
  %500 = vmatpush2.msra.mxu0 0.0
  %501 = vmatprep.subr.mxu0 0.0
  %502 = vmatpush2.msra.mxu0 0.0
  %503 = vmatprep.subr.mxu0 0.0
  %504 = vmatpush2.msra.mxu0 0.0
  %505 = vmatprep.subr.mxu0 0.0
  %506 = vmatpush2.msra.mxu0 0.0
  %507 = vmatprep.subr.mxu0 0.0
  %508 = vmatpush2.msra.mxu0 0.0
  %509 = vmatprep.subr.mxu0 0.0
  %510 = vmatpush2.msra.mxu0 0.0
  %511 = vmatprep.subr.mxu0 0.0
  %512 = vmatpush2.msra.mxu0 0.0
  %513 = vmatprep.subr.mxu0 0.0
  %514 = vmatpush2.msra.mxu0 0.0
  %515 = vmatprep.mubr.f32.mxu0 0.0
  %516 = vmatmul.mubr.f32.gmra.mxu0 %v449
  %v517 = vpop.f32.mrf.mxu0
  %v518 = vadd.f32 0.0, %v517
  %v519 = vpop.f32.mrf.mxu0
  %520 = vdwg.mxu0
  %v521 = vadd.f32 %v448, %v518
  %v522 = vsub.f32 0.0, %v521
  %v523 = vmul.f32 %v522, 1.442695
  %v524 = vpow.pop %v523
  %v525 = vadd.f32 %v524, 1.0
  %v526 = vrcp.pop %v525
  %v527 = vmul.f32 1.0, %v526
  %v528 = vtanh.pop %v521
  %v529 = vmul.f32 %v527, %v435
  %531 = vrot.lane.b32.xlu0 %v528, 32
  %v532 = vpop.permute.xlu0 %531
  %v534 = vmul.f32 %v527, %v532
  %536 = vrot.lane.b32.xlu0 %v534, 32
  %v537 = vpop.permute.xlu0 %536
  %v539 = vadd.f32 %v529, %v537
  %v540 = vtanh.pop %v539
  %542 = vrot.lane.b32.xlu0 %v540, 32
  %v543 = vpop.permute.xlu0 %542
  %v545 = vmul.f32 %v527, %v543
  %547 = vrot.lane.b32.xlu0 %v545, 64
  %v548 = vpop.permute.xlu0 %547
  %s550 = scalar_lea.vmem %s8, 8
  %551 = vst.msk [vmem:[%s550] sm:$0xff] %vm51, %v548
  %s552 = scalar_lea.vmem [#allocation2], 16
  %v553 = vld [vmem:[%s552] sm:$0xff]
  %v554 = vsel %vm51, %v548, 0
  %556 = vmatprep.subr.mxu0 0.0
  %557 = vmatpush1.msra.mxu0 0.0
  %558 = vmatprep.subr.mxu0 0.0
  %559 = vmatpush1.msra.mxu0 0.0
  %560 = vmatprep.subr.mxu0 0.0
  %561 = vmatpush1.msra.mxu0 0.0
  %562 = vmatprep.subr.mxu0 0.0
  %563 = vmatpush1.msra.mxu0 0.0
  %564 = vmatprep.subr.mxu0 0.0
  %565 = vmatpush1.msra.mxu0 0.0
  %566 = vmatprep.subr.mxu0 0.0
  %567 = vmatpush1.msra.mxu0 0.0
  %568 = vmatprep.subr.mxu0 0.0
  %569 = vmatpush1.msra.mxu0 0.0
  %570 = vmatprep.subr.mxu0 0.0
  %571 = vmatpush1.msra.mxu0 0.0
  %572 = vmatprep.subr.mxu0 0.0
  %573 = vmatpush1.msra.mxu0 0.0
  %574 = vmatprep.subr.mxu0 0.0
  %575 = vmatpush1.msra.mxu0 0.0
  %576 = vmatprep.subr.mxu0 0.0
  %577 = vmatpush1.msra.mxu0 0.0
  %578 = vmatprep.subr.mxu0 0.0
  %579 = vmatpush1.msra.mxu0 0.0
  %580 = vmatprep.subr.mxu0 0.0
  %581 = vmatpush1.msra.mxu0 %v336
  %582 = vmatprep.subr.mxu0 0.0
  %583 = vmatpush1.msra.mxu0 %v335
  %584 = vmatprep.subr.mxu0 0.0
  %585 = vmatpush1.msra.mxu0 %v334
  %586 = vmatprep.subr.mxu0 0.0
  %587 = vmatpush1.msra.mxu0 %v333
  %588 = vmatprep.subr.mxu0 0.0
  %589 = vmatpush2.msra.mxu0 0.0
  %590 = vmatprep.subr.mxu0 0.0
  %591 = vmatpush2.msra.mxu0 0.0
  %592 = vmatprep.subr.mxu0 0.0
  %593 = vmatpush2.msra.mxu0 0.0
  %594 = vmatprep.subr.mxu0 0.0
  %595 = vmatpush2.msra.mxu0 0.0
  %596 = vmatprep.subr.mxu0 0.0
  %597 = vmatpush2.msra.mxu0 0.0
  %598 = vmatprep.subr.mxu0 0.0
  %599 = vmatpush2.msra.mxu0 0.0
  %600 = vmatprep.subr.mxu0 0.0
  %601 = vmatpush2.msra.mxu0 0.0
  %602 = vmatprep.subr.mxu0 0.0
  %603 = vmatpush2.msra.mxu0 0.0
  %604 = vmatprep.subr.mxu0 0.0
  %605 = vmatpush2.msra.mxu0 0.0
  %606 = vmatprep.subr.mxu0 0.0
  %607 = vmatpush2.msra.mxu0 0.0
  %608 = vmatprep.subr.mxu0 0.0
  %609 = vmatpush2.msra.mxu0 0.0
  %610 = vmatprep.subr.mxu0 0.0
  %611 = vmatpush2.msra.mxu0 0.0
  %612 = vmatprep.subr.mxu0 0.0
  %613 = vmatpush2.msra.mxu0 0.0
  %614 = vmatprep.subr.mxu0 0.0
  %615 = vmatpush2.msra.mxu0 0.0
  %616 = vmatprep.subr.mxu0 0.0
  %617 = vmatpush2.msra.mxu0 0.0
  %618 = vmatprep.subr.mxu0 0.0
  %619 = vmatpush2.msra.mxu0 0.0
  %620 = vmatprep.mubr.f32.mxu0 0.0
  %621 = vmatmul.mubr.f32.gmra.mxu0 %v554
  %v622 = vpop.f32.mrf.mxu0
  %v623 = vadd.f32 0.0, %v622
  %v624 = vpop.f32.mrf.mxu0
  %625 = vdwg.mxu0
  %v626 = vadd.f32 %v553, %v623
  %v627 = vsub.f32 0.0, %v626
  %v628 = vmul.f32 %v627, 1.442695
  %v629 = vpow.pop %v628
  %v630 = vadd.f32 %v629, 1.0
  %v631 = vrcp.pop %v630
  %v632 = vmul.f32 1.0, %v631
  %v633 = vtanh.pop %v626
  %v634 = vmul.f32 %v632, %v539
  %636 = vrot.lane.b32.xlu0 %v633, 32
  %v637 = vpop.permute.xlu0 %636
  %v639 = vmul.f32 %v632, %v637
  %641 = vrot.lane.b32.xlu0 %v639, 32
  %v642 = vpop.permute.xlu0 %641
  %v644 = vadd.f32 %v634, %v642
  %v645 = vtanh.pop %v644
  %647 = vrot.lane.b32.xlu0 %v645, 32
  %v648 = vpop.permute.xlu0 %647
  %v650 = vmul.f32 %v632, %v648
  %652 = vrot.lane.b32.xlu0 %v650, 64
  %v653 = vpop.permute.xlu0 %652
  %s655 = scalar_lea.vmem %s8, 16
  %656 = vst.msk [vmem:[%s655] sm:$0xff] %vm51, %v653
  %s657 = scalar_lea.vmem [#allocation2], 24
  %v658 = vld [vmem:[%s657] sm:$0xff]
  %v659 = vsel %vm51, %v653, 0
  %661 = vmatprep.subr.mxu0 0.0
  %662 = vmatpush1.msra.mxu0 0.0
  %663 = vmatprep.subr.mxu0 0.0
  %664 = vmatpush1.msra.mxu0 0.0
  %665 = vmatprep.subr.mxu0 0.0
  %666 = vmatpush1.msra.mxu0 0.0
  %667 = vmatprep.subr.mxu0 0.0
  %668 = vmatpush1.msra.mxu0 0.0
  %669 = vmatprep.subr.mxu0 0.0
  %670 = vmatpush1.msra.mxu0 0.0
  %671 = vmatprep.subr.mxu0 0.0
  %672 = vmatpush1.msra.mxu0 0.0
  %673 = vmatprep.subr.mxu0 0.0
  %674 = vmatpush1.msra.mxu0 0.0
  %675 = vmatprep.subr.mxu0 0.0
  %676 = vmatpush1.msra.mxu0 0.0
  %677 = vmatprep.subr.mxu0 0.0
  %678 = vmatpush1.msra.mxu0 0.0
  %679 = vmatprep.subr.mxu0 0.0
  %680 = vmatpush1.msra.mxu0 0.0
  %681 = vmatprep.subr.mxu0 0.0
  %682 = vmatpush1.msra.mxu0 0.0
  %683 = vmatprep.subr.mxu0 0.0
  %684 = vmatpush1.msra.mxu0 0.0
  %685 = vmatprep.subr.mxu0 0.0
  %686 = vmatpush1.msra.mxu0 %v336
  %687 = vmatprep.subr.mxu0 0.0
  %688 = vmatpush1.msra.mxu0 %v335
  %689 = vmatprep.subr.mxu0 0.0
  %690 = vmatpush1.msra.mxu0 %v334
  %691 = vmatprep.subr.mxu0 0.0
  %692 = vmatpush1.msra.mxu0 %v333
  %693 = vmatprep.subr.mxu0 0.0
  %694 = vmatpush2.msra.mxu0 0.0
  %695 = vmatprep.subr.mxu0 0.0
  %696 = vmatpush2.msra.mxu0 0.0
  %697 = vmatprep.subr.mxu0 0.0
  %698 = vmatpush2.msra.mxu0 0.0
  %699 = vmatprep.subr.mxu0 0.0
  %700 = vmatpush2.msra.mxu0 0.0
  %701 = vmatprep.subr.mxu0 0.0
  %702 = vmatpush2.msra.mxu0 0.0
  %703 = vmatprep.subr.mxu0 0.0
  %704 = vmatpush2.msra.mxu0 0.0
  %705 = vmatprep.subr.mxu0 0.0
  %706 = vmatpush2.msra.mxu0 0.0
  %707 = vmatprep.subr.mxu0 0.0
  %708 = vmatpush2.msra.mxu0 0.0
  %709 = vmatprep.subr.mxu0 0.0
  %710 = vmatpush2.msra.mxu0 0.0
  %711 = vmatprep.subr.mxu0 0.0
  %712 = vmatpush2.msra.mxu0 0.0
  %713 = vmatprep.subr.mxu0 0.0
  %714 = vmatpush2.msra.mxu0 0.0
  %715 = vmatprep.subr.mxu0 0.0
  %716 = vmatpush2.msra.mxu0 0.0
  %717 = vmatprep.subr.mxu0 0.0
  %718 = vmatpush2.msra.mxu0 0.0
  %719 = vmatprep.subr.mxu0 0.0
  %720 = vmatpush2.msra.mxu0 0.0
  %721 = vmatprep.subr.mxu0 0.0
  %722 = vmatpush2.msra.mxu0 0.0
  %723 = vmatprep.subr.mxu0 0.0
  %724 = vmatpush2.msra.mxu0 0.0
  %725 = vmatprep.mubr.f32.mxu0 0.0
  %726 = vmatmul.mubr.f32.gmra.mxu0 %v659
  %v727 = vpop.f32.mrf.mxu0
  %v728 = vadd.f32 0.0, %v727
  %v729 = vpop.f32.mrf.mxu0
  %730 = vdwg.mxu0
  %v731 = vadd.f32 %v658, %v728
  %v732 = vsub.f32 0.0, %v731
  %v733 = vmul.f32 %v732, 1.442695
  %v734 = vpow.pop %v733
  %v735 = vadd.f32 %v734, 1.0
  %v736 = vrcp.pop %v735
  %v737 = vmul.f32 1.0, %v736
  %v738 = vtanh.pop %v731
  %v739 = vmul.f32 %v737, %v644
  %741 = vrot.lane.b32.xlu0 %v738, 32
  %v742 = vpop.permute.xlu0 %741
  %v744 = vmul.f32 %v737, %v742
  %746 = vrot.lane.b32.xlu0 %v744, 32
  %v747 = vpop.permute.xlu0 %746
  %v749 = vadd.f32 %v739, %v747
  %v750 = vtanh.pop %v749
  %752 = vrot.lane.b32.xlu0 %v750, 32
  %v753 = vpop.permute.xlu0 %752
  %v755 = vmul.f32 %v737, %v753
  %757 = vrot.lane.b32.xlu0 %v755, 64
  %v758 = vpop.permute.xlu0 %757
  %s760 = scalar_lea.vmem %s8, 24
  %761 = vst.msk [vmem:[%s760] sm:$0xff] %vm51, %v758
  %s762 = scalar_lea.vmem [#allocation2], 32
  %v763 = vld [vmem:[%s762] sm:$0xff]
  %v764 = vsel %vm51, %v758, 0
  %766 = vmatprep.subr.mxu0 0.0
  %767 = vmatpush1.msra.mxu0 0.0
  %768 = vmatprep.subr.mxu0 0.0
  %769 = vmatpush1.msra.mxu0 0.0
  %770 = vmatprep.subr.mxu0 0.0
  %771 = vmatpush1.msra.mxu0 0.0
  %772 = vmatprep.subr.mxu0 0.0
  %773 = vmatpush1.msra.mxu0 0.0
  %774 = vmatprep.subr.mxu0 0.0
  %775 = vmatpush1.msra.mxu0 0.0
  %776 = vmatprep.subr.mxu0 0.0
  %777 = vmatpush1.msra.mxu0 0.0
  %778 = vmatprep.subr.mxu0 0.0
  %779 = vmatpush1.msra.mxu0 0.0
  %780 = vmatprep.subr.mxu0 0.0
  %781 = vmatpush1.msra.mxu0 0.0
  %782 = vmatprep.subr.mxu0 0.0
  %783 = vmatpush1.msra.mxu0 0.0
  %784 = vmatprep.subr.mxu0 0.0
  %785 = vmatpush1.msra.mxu0 0.0
  %786 = vmatprep.subr.mxu0 0.0
  %787 = vmatpush1.msra.mxu0 0.0
  %788 = vmatprep.subr.mxu0 0.0
  %789 = vmatpush1.msra.mxu0 0.0
  %790 = vmatprep.subr.mxu0 0.0
  %791 = vmatpush1.msra.mxu0 %v336
  %792 = vmatprep.subr.mxu0 0.0
  %793 = vmatpush1.msra.mxu0 %v335
  %794 = vmatprep.subr.mxu0 0.0
  %795 = vmatpush1.msra.mxu0 %v334
  %796 = vmatprep.subr.mxu0 0.0
  %797 = vmatpush1.msra.mxu0 %v333
  %798 = vmatprep.subr.mxu0 0.0
  %799 = vmatpush2.msra.mxu0 0.0
  %800 = vmatprep.subr.mxu0 0.0
  %801 = vmatpush2.msra.mxu0 0.0
  %802 = vmatprep.subr.mxu0 0.0
  %803 = vmatpush2.msra.mxu0 0.0
  %804 = vmatprep.subr.mxu0 0.0
  %805 = vmatpush2.msra.mxu0 0.0
  %806 = vmatprep.subr.mxu0 0.0
  %807 = vmatpush2.msra.mxu0 0.0
  %808 = vmatprep.subr.mxu0 0.0
  %809 = vmatpush2.msra.mxu0 0.0
  %810 = vmatprep.subr.mxu0 0.0
  %811 = vmatpush2.msra.mxu0 0.0
  %812 = vmatprep.subr.mxu0 0.0
  %813 = vmatpush2.msra.mxu0 0.0
  %814 = vmatprep.subr.mxu0 0.0
  %815 = vmatpush2.msra.mxu0 0.0
  %816 = vmatprep.subr.mxu0 0.0
  %817 = vmatpush2.msra.mxu0 0.0
  %818 = vmatprep.subr.mxu0 0.0
  %819 = vmatpush2.msra.mxu0 0.0
  %820 = vmatprep.subr.mxu0 0.0
  %821 = vmatpush2.msra.mxu0 0.0
  %822 = vmatprep.subr.mxu0 0.0
  %823 = vmatpush2.msra.mxu0 0.0
  %824 = vmatprep.subr.mxu0 0.0
  %825 = vmatpush2.msra.mxu0 0.0
  %826 = vmatprep.subr.mxu0 0.0
  %827 = vmatpush2.msra.mxu0 0.0
  %828 = vmatprep.subr.mxu0 0.0
  %829 = vmatpush2.msra.mxu0 0.0
  %830 = vmatprep.mubr.f32.mxu0 0.0
  %831 = vmatmul.mubr.f32.gmra.mxu0 %v764
  %v832 = vpop.f32.mrf.mxu0
  %v833 = vadd.f32 0.0, %v832
  %v834 = vpop.f32.mrf.mxu0
  %835 = vdwg.mxu0
  %v836 = vadd.f32 %v763, %v833
  %v837 = vsub.f32 0.0, %v836
  %v838 = vmul.f32 %v837, 1.442695
  %v839 = vpow.pop %v838
  %v840 = vadd.f32 %v839, 1.0
  %v841 = vrcp.pop %v840
  %v842 = vmul.f32 1.0, %v841
  %v843 = vtanh.pop %v836
  %v844 = vmul.f32 %v842, %v749
  %846 = vrot.lane.b32.xlu0 %v843, 32
  %v847 = vpop.permute.xlu0 %846
  %v849 = vmul.f32 %v842, %v847
  %851 = vrot.lane.b32.xlu0 %v849, 32
  %v852 = vpop.permute.xlu0 %851
  %v854 = vadd.f32 %v844, %v852
  %v855 = vtanh.pop %v854
  %857 = vrot.lane.b32.xlu0 %v855, 32
  %v858 = vpop.permute.xlu0 %857
  %v860 = vmul.f32 %v842, %v858
  %862 = vrot.lane.b32.xlu0 %v860, 64
  %v863 = vpop.permute.xlu0 %862
  %s865 = scalar_lea.vmem %s8, 32
  %866 = vst.msk [vmem:[%s865] sm:$0xff] %vm51, %v863
  %s867 = scalar_lea.vmem [#allocation2], 40
  %v868 = vld [vmem:[%s867] sm:$0xff]
  %v869 = vsel %vm51, %v863, 0
  %871 = vmatprep.subr.mxu0 0.0
  %872 = vmatpush1.msra.mxu0 0.0
  %873 = vmatprep.subr.mxu0 0.0
  %874 = vmatpush1.msra.mxu0 0.0
  %875 = vmatprep.subr.mxu0 0.0
  %876 = vmatpush1.msra.mxu0 0.0
  %877 = vmatprep.subr.mxu0 0.0
  %878 = vmatpush1.msra.mxu0 0.0
  %879 = vmatprep.subr.mxu0 0.0
  %880 = vmatpush1.msra.mxu0 0.0
  %881 = vmatprep.subr.mxu0 0.0
  %882 = vmatpush1.msra.mxu0 0.0
  %883 = vmatprep.subr.mxu0 0.0
  %884 = vmatpush1.msra.mxu0 0.0
  %885 = vmatprep.subr.mxu0 0.0
  %886 = vmatpush1.msra.mxu0 0.0
  %887 = vmatprep.subr.mxu0 0.0
  %888 = vmatpush1.msra.mxu0 0.0
  %889 = vmatprep.subr.mxu0 0.0
  %890 = vmatpush1.msra.mxu0 0.0
  %891 = vmatprep.subr.mxu0 0.0
  %892 = vmatpush1.msra.mxu0 0.0
  %893 = vmatprep.subr.mxu0 0.0
  %894 = vmatpush1.msra.mxu0 0.0
  %895 = vmatprep.subr.mxu0 0.0
  %896 = vmatpush1.msra.mxu0 %v336
  %897 = vmatprep.subr.mxu0 0.0
  %898 = vmatpush1.msra.mxu0 %v335
  %899 = vmatprep.subr.mxu0 0.0
  %900 = vmatpush1.msra.mxu0 %v334
  %901 = vmatprep.subr.mxu0 0.0
  %902 = vmatpush1.msra.mxu0 %v333
  %903 = vmatprep.subr.mxu0 0.0
  %904 = vmatpush2.msra.mxu0 0.0
  %905 = vmatprep.subr.mxu0 0.0
  %906 = vmatpush2.msra.mxu0 0.0
  %907 = vmatprep.subr.mxu0 0.0
  %908 = vmatpush2.msra.mxu0 0.0
  %909 = vmatprep.subr.mxu0 0.0
  %910 = vmatpush2.msra.mxu0 0.0
  %911 = vmatprep.subr.mxu0 0.0
  %912 = vmatpush2.msra.mxu0 0.0
  %913 = vmatprep.subr.mxu0 0.0
  %914 = vmatpush2.msra.mxu0 0.0
  %915 = vmatprep.subr.mxu0 0.0
  %916 = vmatpush2.msra.mxu0 0.0
  %917 = vmatprep.subr.mxu0 0.0
  %918 = vmatpush2.msra.mxu0 0.0
  %919 = vmatprep.subr.mxu0 0.0
  %920 = vmatpush2.msra.mxu0 0.0
  %921 = vmatprep.subr.mxu0 0.0
  %922 = vmatpush2.msra.mxu0 0.0
  %923 = vmatprep.subr.mxu0 0.0
  %924 = vmatpush2.msra.mxu0 0.0
  %925 = vmatprep.subr.mxu0 0.0
  %926 = vmatpush2.msra.mxu0 0.0
  %927 = vmatprep.subr.mxu0 0.0
  %928 = vmatpush2.msra.mxu0 0.0
  %929 = vmatprep.subr.mxu0 0.0
  %930 = vmatpush2.msra.mxu0 0.0
  %931 = vmatprep.subr.mxu0 0.0
  %932 = vmatpush2.msra.mxu0 0.0
  %933 = vmatprep.subr.mxu0 0.0
  %934 = vmatpush2.msra.mxu0 0.0
  %935 = vmatprep.mubr.f32.mxu0 0.0
  %936 = vmatmul.mubr.f32.gmra.mxu0 %v869
  %v937 = vpop.f32.mrf.mxu0
  %v938 = vadd.f32 0.0, %v937
  %v939 = vpop.f32.mrf.mxu0
  %940 = vdwg.mxu0
  %v941 = vadd.f32 %v868, %v938
  %v942 = vsub.f32 0.0, %v941
  %v943 = vmul.f32 %v942, 1.442695
  %v944 = vpow.pop %v943
  %v945 = vadd.f32 %v944, 1.0
  %v946 = vrcp.pop %v945
  %v947 = vmul.f32 1.0, %v946
  %v948 = vtanh.pop %v941
  %v949 = vmul.f32 %v947, %v854
  %951 = vrot.lane.b32.xlu0 %v948, 32
  %v952 = vpop.permute.xlu0 %951
  %v954 = vmul.f32 %v947, %v952
  %956 = vrot.lane.b32.xlu0 %v954, 32
  %v957 = vpop.permute.xlu0 %956
  %v959 = vadd.f32 %v949, %v957
  %v960 = vtanh.pop %v959
  %962 = vrot.lane.b32.xlu0 %v960, 32
  %v963 = vpop.permute.xlu0 %962
  %v965 = vmul.f32 %v947, %v963
  %967 = vrot.lane.b32.xlu0 %v965, 64
  %v968 = vpop.permute.xlu0 %967
  %s970 = scalar_lea.vmem %s8, 40
  %971 = vst.msk [vmem:[%s970] sm:$0xff] %vm51, %v968
  %s972 = scalar_lea.vmem [#allocation2], 48
  %v973 = vld [vmem:[%s972] sm:$0xff]
  %v974 = vsel %vm51, %v968, 0
  %976 = vmatprep.subr.mxu0 0.0
  %977 = vmatpush1.msra.mxu0 0.0
  %978 = vmatprep.subr.mxu0 0.0
  %979 = vmatpush1.msra.mxu0 0.0
  %980 = vmatprep.subr.mxu0 0.0
  %981 = vmatpush1.msra.mxu0 0.0
  %982 = vmatprep.subr.mxu0 0.0
  %983 = vmatpush1.msra.mxu0 0.0
  %984 = vmatprep.subr.mxu0 0.0
  %985 = vmatpush1.msra.mxu0 0.0
  %986 = vmatprep.subr.mxu0 0.0
  %987 = vmatpush1.msra.mxu0 0.0
  %988 = vmatprep.subr.mxu0 0.0
  %989 = vmatpush1.msra.mxu0 0.0
  %990 = vmatprep.subr.mxu0 0.0
  %991 = vmatpush1.msra.mxu0 0.0
  %992 = vmatprep.subr.mxu0 0.0
  %993 = vmatpush1.msra.mxu0 0.0
  %994 = vmatprep.subr.mxu0 0.0
  %995 = vmatpush1.msra.mxu0 0.0
  %996 = vmatprep.subr.mxu0 0.0
  %997 = vmatpush1.msra.mxu0 0.0
  %998 = vmatprep.subr.mxu0 0.0
  %999 = vmatpush1.msra.mxu0 0.0
  %1000 = vmatprep.subr.mxu0 0.0
  %1001 = vmatpush1.msra.mxu0 %v336
  %1002 = vmatprep.subr.mxu0 0.0
  %1003 = vmatpush1.msra.mxu0 %v335
  %1004 = vmatprep.subr.mxu0 0.0
  %1005 = vmatpush1.msra.mxu0 %v334
  %1006 = vmatprep.subr.mxu0 0.0
  %1007 = vmatpush1.msra.mxu0 %v333
  %1008 = vmatprep.subr.mxu0 0.0
  %1009 = vmatpush2.msra.mxu0 0.0
  %1010 = vmatprep.subr.mxu0 0.0
  %1011 = vmatpush2.msra.mxu0 0.0
  %1012 = vmatprep.subr.mxu0 0.0
  %1013 = vmatpush2.msra.mxu0 0.0
  %1014 = vmatprep.subr.mxu0 0.0
  %1015 = vmatpush2.msra.mxu0 0.0
  %1016 = vmatprep.subr.mxu0 0.0
  %1017 = vmatpush2.msra.mxu0 0.0
  %1018 = vmatprep.subr.mxu0 0.0
  %1019 = vmatpush2.msra.mxu0 0.0
  %1020 = vmatprep.subr.mxu0 0.0
  %1021 = vmatpush2.msra.mxu0 0.0
  %1022 = vmatprep.subr.mxu0 0.0
  %1023 = vmatpush2.msra.mxu0 0.0
  %1024 = vmatprep.subr.mxu0 0.0
  %1025 = vmatpush2.msra.mxu0 0.0
  %1026 = vmatprep.subr.mxu0 0.0
  %1027 = vmatpush2.msra.mxu0 0.0
  %1028 = vmatprep.subr.mxu0 0.0
  %1029 = vmatpush2.msra.mxu0 0.0
  %1030 = vmatprep.subr.mxu0 0.0
  %1031 = vmatpush2.msra.mxu0 0.0
  %1032 = vmatprep.subr.mxu0 0.0
  %1033 = vmatpush2.msra.mxu0 0.0
  %1034 = vmatprep.subr.mxu0 0.0
  %1035 = vmatpush2.msra.mxu0 0.0
  %1036 = vmatprep.subr.mxu0 0.0
  %1037 = vmatpush2.msra.mxu0 0.0
  %1038 = vmatprep.subr.mxu0 0.0
  %1039 = vmatpush2.msra.mxu0 0.0
  %1040 = vmatprep.mubr.f32.mxu0 0.0
  %1041 = vmatmul.mubr.f32.gmra.mxu0 %v974
  %v1042 = vpop.f32.mrf.mxu0
  %v1043 = vadd.f32 0.0, %v1042
  %v1044 = vpop.f32.mrf.mxu0
  %1045 = vdwg.mxu0
  %v1046 = vadd.f32 %v973, %v1043
  %v1047 = vsub.f32 0.0, %v1046
  %v1048 = vmul.f32 %v1047, 1.442695
  %v1049 = vpow.pop %v1048
  %v1050 = vadd.f32 %v1049, 1.0
  %v1051 = vrcp.pop %v1050
  %v1052 = vmul.f32 1.0, %v1051
  %v1053 = vtanh.pop %v1046
  %v1054 = vmul.f32 %v1052, %v959
  %1056 = vrot.lane.b32.xlu0 %v1053, 32
  %v1057 = vpop.permute.xlu0 %1056
  %v1059 = vmul.f32 %v1052, %v1057
  %1061 = vrot.lane.b32.xlu0 %v1059, 32
  %v1062 = vpop.permute.xlu0 %1061
  %v1064 = vadd.f32 %v1054, %v1062
  %v1065 = vtanh.pop %v1064
  %1067 = vrot.lane.b32.xlu0 %v1065, 32
  %v1068 = vpop.permute.xlu0 %1067
  %v1070 = vmul.f32 %v1052, %v1068
  %1072 = vrot.lane.b32.xlu0 %v1070, 64
  %v1073 = vpop.permute.xlu0 %1072
  %s1075 = scalar_lea.vmem %s8, 48
  %1076 = vst.msk [vmem:[%s1075] sm:$0xff] %vm51, %v1073
  %s1077 = scalar_lea.vmem [#allocation2], 56
  %v1078 = vld [vmem:[%s1077] sm:$0xff]
  %v1079 = vsel %vm51, %v1073, 0
  %1081 = vmatprep.subr.mxu0 0.0
  %1082 = vmatpush1.msra.mxu0 0.0
  %1083 = vmatprep.subr.mxu0 0.0
  %1084 = vmatpush1.msra.mxu0 0.0
  %1085 = vmatprep.subr.mxu0 0.0
  %1086 = vmatpush1.msra.mxu0 0.0
  %1087 = vmatprep.subr.mxu0 0.0
  %1088 = vmatpush1.msra.mxu0 0.0
  %1089 = vmatprep.subr.mxu0 0.0
  %1090 = vmatpush1.msra.mxu0 0.0
  %1091 = vmatprep.subr.mxu0 0.0
  %1092 = vmatpush1.msra.mxu0 0.0
  %1093 = vmatprep.subr.mxu0 0.0
  %1094 = vmatpush1.msra.mxu0 0.0
  %1095 = vmatprep.subr.mxu0 0.0
  %1096 = vmatpush1.msra.mxu0 0.0
  %1097 = vmatprep.subr.mxu0 0.0
  %1098 = vmatpush1.msra.mxu0 0.0
  %1099 = vmatprep.subr.mxu0 0.0
  %1100 = vmatpush1.msra.mxu0 0.0
  %1101 = vmatprep.subr.mxu0 0.0
  %1102 = vmatpush1.msra.mxu0 0.0
  %1103 = vmatprep.subr.mxu0 0.0
  %1104 = vmatpush1.msra.mxu0 0.0
  %1105 = vmatprep.subr.mxu0 0.0
  %1106 = vmatpush1.msra.mxu0 %v336
  %1107 = vmatprep.subr.mxu0 0.0
  %1108 = vmatpush1.msra.mxu0 %v335
  %1109 = vmatprep.subr.mxu0 0.0
  %1110 = vmatpush1.msra.mxu0 %v334
  %1111 = vmatprep.subr.mxu0 0.0
  %1112 = vmatpush1.msra.mxu0 %v333
  %1113 = vmatprep.subr.mxu0 0.0
  %1114 = vmatpush2.msra.mxu0 0.0
  %1115 = vmatprep.subr.mxu0 0.0
  %1116 = vmatpush2.msra.mxu0 0.0
  %1117 = vmatprep.subr.mxu0 0.0
  %1118 = vmatpush2.msra.mxu0 0.0
  %1119 = vmatprep.subr.mxu0 0.0
  %1120 = vmatpush2.msra.mxu0 0.0
  %1121 = vmatprep.subr.mxu0 0.0
  %1122 = vmatpush2.msra.mxu0 0.0
  %1123 = vmatprep.subr.mxu0 0.0
  %1124 = vmatpush2.msra.mxu0 0.0
  %1125 = vmatprep.subr.mxu0 0.0
  %1126 = vmatpush2.msra.mxu0 0.0
  %1127 = vmatprep.subr.mxu0 0.0
  %1128 = vmatpush2.msra.mxu0 0.0
  %1129 = vmatprep.subr.mxu0 0.0
  %1130 = vmatpush2.msra.mxu0 0.0
  %1131 = vmatprep.subr.mxu0 0.0
  %1132 = vmatpush2.msra.mxu0 0.0
  %1133 = vmatprep.subr.mxu0 0.0
  %1134 = vmatpush2.msra.mxu0 0.0
  %1135 = vmatprep.subr.mxu0 0.0
  %1136 = vmatpush2.msra.mxu0 0.0
  %1137 = vmatprep.subr.mxu0 0.0
  %1138 = vmatpush2.msra.mxu0 0.0
  %1139 = vmatprep.subr.mxu0 0.0
  %1140 = vmatpush2.msra.mxu0 0.0
  %1141 = vmatprep.subr.mxu0 0.0
  %1142 = vmatpush2.msra.mxu0 0.0
  %1143 = vmatprep.subr.mxu0 0.0
  %1144 = vmatpush2.msra.mxu0 0.0
  %1145 = vmatprep.mubr.f32.mxu0 0.0
  %1146 = vmatmul.mubr.f32.gmra.mxu0 %v1079
  %v1147 = vpop.f32.mrf.mxu0
  %v1148 = vadd.f32 0.0, %v1147
  %v1149 = vpop.f32.mrf.mxu0
  %1150 = vdwg.mxu0
  %v1151 = vadd.f32 %v1078, %v1148
  %v1152 = vsub.f32 0.0, %v1151
  %v1153 = vmul.f32 %v1152, 1.442695
  %v1154 = vpow.pop %v1153
  %v1155 = vadd.f32 %v1154, 1.0
  %v1156 = vrcp.pop %v1155
  %v1157 = vmul.f32 1.0, %v1156
  %v1158 = vtanh.pop %v1151
  %v1159 = vmul.f32 %v1157, %v1064
  %1161 = vrot.lane.b32.xlu0 %v1158, 32
  %v1162 = vpop.permute.xlu0 %1161
  %v1164 = vmul.f32 %v1157, %v1162
  %1166 = vrot.lane.b32.xlu0 %v1164, 32
  %v1167 = vpop.permute.xlu0 %1166
  %v1169 = vadd.f32 %v1159, %v1167
  %v1170 = vtanh.pop %v1169
  %1172 = vrot.lane.b32.xlu0 %v1170, 32
  %v1173 = vpop.permute.xlu0 %1172
  %v1175 = vmul.f32 %v1157, %v1173
  %1177 = vrot.lane.b32.xlu0 %v1175, 64
  %v1178 = vpop.permute.xlu0 %1177
  %s1180 = scalar_lea.vmem %s8, 56
  %1181 = vst.msk [vmem:[%s1180] sm:$0xff] %vm51, %v1178
  %1182 = vst.msk [vmem:[%s9] sm:$0xff] %vm51, %v1178
  %1184 = vrot.lane.b32.xlu0 %v1169, 96
  %v1185 = vpop.permute.xlu0 %1184
  %1187 = vst.msk [vmem:[%s10] sm:$0xff] %vm51, %v1185
  // Predicated region
  $region38: #{recurrent_residual_block.2} parent=0 // pred_check
    _
  $region39: #{recurrent_residual_block.2} parent=0 // pred_check_branch
    %1189 = sbr.rel (0) target = $region41
  $region40: #{recurrent_residual_block.2} parent=0 // pred_region
    _
  $region41: #{recurrent_residual_block.2} parent=0 // pred_fallthru
    _
  // Predicated region
  $region42: #{recurrent_residual_block.2} parent=0 // pred_check
    _
  $region43: #{recurrent_residual_block.2} parent=0 // pred_check_branch
    %1191 = sbr.rel (0) target = $region45
  $region44: #{recurrent_residual_block.2} parent=0 // pred_region
    _
  $region45: #{recurrent_residual_block.2} parent=0 // pred_fallthru
    _
  // Predicated region
  $region46: #{recurrent_residual_block.2} parent=0 // pred_check
    _
  $region47: #{recurrent_residual_block.2} parent=0 // pred_check_branch
    %1193 = sbr.rel (0) target = $region49
  $region48: #{recurrent_residual_block.2} parent=0 // pred_region
    _
  $region49: #{recurrent_residual_block.2} parent=0 // pred_fallthru
    _
  // Predicated region
  $region50: #{recurrent_residual_block.2} parent=0 // pred_check
    _
  $region51: #{recurrent_residual_block.2} parent=0 // pred_check_branch
    %1195 = sbr.rel (0) target = $region53
  $region52: #{recurrent_residual_block.2} parent=0 // pred_region
    _
  $region53: #{recurrent_residual_block.2} parent=0 // pred_fallthru
    _
  // Predicated region
  $region54: #{recurrent_residual_block.2} parent=0 // pred_check
    _
  $region55: #{recurrent_residual_block.2} parent=0 // pred_check_branch
    %1197 = sbr.rel (0) target = $region57
  $region56: #{recurrent_residual_block.2} parent=0 // pred_region
    _
  $region57: #{recurrent_residual_block.2} parent=0 // pred_fallthru
    _
  // Predicated region
  $region58: #{recurrent_residual_block.2} parent=0 // pred_check
    _
  $region59: #{recurrent_residual_block.2} parent=0 // pred_check_branch
    %1199 = sbr.rel (0) target = $region61
  $region60: #{recurrent_residual_block.2} parent=0 // pred_region
    _
  $region61: #{recurrent_residual_block.2} parent=0 // pred_fallthru
    _

</llo_original>
